<compile_context>
chip_gen: v6e
topology: v6e:2x2x1
jax: 0.10.0
libtpu: 0.0.40
codegen_flags: <defaults>
</compile_context>

<pallas_src>
import functools

import numpy as np
import jax
import jax.numpy as jnp
from jax.experimental import pallas as pl
from jax.experimental.pallas import tpu as pltpu

WINDOW_SIZE = 11


def _gaussian_1d(ws=WINDOW_SIZE, sigma=1.5):
    """Same construction as torch `gaussian` (normalized 1-D gaussian)."""
    g = np.array(
        [np.exp(-((i - ws // 2) ** 2) / (2.0 * sigma ** 2)) for i in range(ws)],
        dtype=np.float32,
    )
    return (g / g.sum()).astype(np.float32)


# ----------------------------------------------------------------------------
# Fused kernel: masked elementwise stats + SSIM (separable 11x11 gaussian).
# ----------------------------------------------------------------------------
def _fused_loss_kernel(x_ref, y_ref, m0_ref, md_ref, ym_ref, ys_ref,
                       mean_ref, std_ref, out_ref, *, w1d, ho, wo):
    x = x_ref[...]
    y = y_ref[...]
    m0 = m0_ref[...]
    md = md_ref[...]

    wmask = m0 * (1.0 - md)          # mask0 * (1 - maskd), shared by both branches

    # ---------------- masked elementwise stats ----------------
    e = x - y
    lsms = (e * e) * wmask

    f_m0 = jnp.sum(m0, axis=1, keepdims=True)     # (R, 1)
    f_md = jnp.sum(md, axis=1, keepdims=True)     # (R, 1)
    head = jnp.where(f_m0 > 0, 1.0, 0.0) * (1.0 - jnp.where(f_md > 0, 1.0, 0.0))

    ym = ym_ref[...]
    ys = ys_ref[...]
    mu_ = mean_ref[...]
    sd = std_ref[...]

    out_ref[0] = jnp.sum(head)                       # sum_h
    out_ref[1] = jnp.sum(jnp.abs(ym - mu_) * head)   # mean_loss numerator
    out_ref[2] = jnp.sum(jnp.abs(ys - sd) * head)    # std_loss numerator
    out_ref[3] = jnp.sum(lsms)                       # loss_miss numerator
    out_ref[4] = jnp.sum(wmask)                      # sum_mask0_wmiss

    # ---------------- SSIM on the masked images ----------------
    a = x * wmask          # img1
    b = y * wmask          # img2

    # dynamic-range selection, same rule as torch ssim() with val_range=None
    l_val = jnp.where(jnp.max(a) > 128.0, 255.0, 1.0) - jnp.where(
        jnp.min(a) < -0.5, -1.0, 0.0)
    c1 = (0.01 * l_val) ** 2
    c2 = (0.03 * l_val) ** 2

    ws_ = len(w1d)

    def blur(img):
        # Separable 11x11 gaussian with "valid" padding: sublane (row) pass,
        # then lane (col) pass.  w1d entries are static python constants.
        r = w1d[0] * img[0:ho, :]
        for di in range(1, ws_):
            r = r + w1d[di] * img[di:di + ho, :]
        c = w1d[0] * r[:, 0:wo]
        for dj in range(1, ws_):
            c = c + w1d[dj] * r[:, dj:dj + wo]
        return c

    # Blurs evaluated one at a time to keep few (ho, .) accumulators live.
    mu1 = blur(a)
    mu2 = blur(b)
    s11 = blur(a * a)
    s22 = blur(b * b)
    s12 = blur(a * b)

    mu1_sq = mu1 * mu1
    mu2_sq = mu2 * mu2
    mu1_mu2 = mu1 * mu2
    sigma1_sq = s11 - mu1_sq
    sigma2_sq = s22 - mu2_sq
    sigma12 = s12 - mu1_mu2
    v1 = 2.0 * sigma12 + c2
    v2 = sigma1_sq + sigma2_sq + c2
    ssim_map = (2.0 * mu1_mu2 + c1) * v1 / ((mu1_sq + mu2_sq + c1) * v2)
    out_ref[5] = jnp.mean(ssim_map)
    out_ref[6] = jnp.float32(0.0)
    out_ref[7] = jnp.float32(0.0)


# ----------------------------------------------------------------------------
# Wrapper mirroring My_loss.forward (print_loss=False path).
# ----------------------------------------------------------------------------
class MyLossPallas:
    def __init__(self, fea_litho, bsize):
        self.fea_litho = fea_litho
        self.fea_len = len(fea_litho)
        self.bsize = bsize
        g = _gaussian_1d(WINDOW_SIZE, 1.5)
        self.window_1d = tuple(float(v) for v in g)          # static kernel consts
        self.window = np.outer(g, g).astype(np.float32)      # 2-D (for reference)

    def __call__(self, x, y, y_ori, mask0, maskd, y_mean, y_std, mean, std):
        # y_ori is accepted for signature parity but (like in PyTorch) unused.
        del y_ori
        r, l = x.shape
        assert r >= WINDOW_SIZE and l >= WINDOW_SIZE, "SSIM needs H,W >= 11"
        f32 = lambda a: jnp.asarray(a, jnp.float32)
        x, y, mask0, maskd = map(f32, (x, y, mask0, maskd))
        ym = f32(y_mean).reshape(r, 1)
        ys = f32(y_std).reshape(r, 1)
        mu = f32(mean).reshape(r, 1)
        sd = f32(std).reshape(r, 1)

        ho, wo = r - WINDOW_SIZE + 1, l - WINDOW_SIZE + 1
        vmem = pl.BlockSpec(memory_space=pltpu.MemorySpace.VMEM)
        smem = pl.BlockSpec(memory_space=pltpu.MemorySpace.SMEM)

        # TODO(synk): for production-scale R, add a row-tiled grid (with an
        # 11-row halo for the SSIM conv) and an explicit vmem_limit_bytes so
        # the working set fits v7x's smaller VMEM; untiled is fine here.
        stats = pl.pallas_call(
            functools.partial(_fused_loss_kernel, w1d=self.window_1d,
                              ho=ho, wo=wo),
            out_shape=jax.ShapeDtypeStruct((8,), jnp.float32),
            in_specs=[vmem] * 8,
            out_specs=smem,
        )(x, y, mask0, maskd, ym, ys, mu, sd)

        sum_h = stats[0]
        denom_h = jnp.where(sum_h == 0, sum_h + 1.0, sum_h)
        mean_loss = stats[1] / denom_h
        std_loss = stats[2] / denom_h
        wms = 4.0
        mean_std_loss = wms * mean_loss + std_loss

        sum_m0_wmiss = stats[4]
        denom_miss = jnp.where(sum_m0_wmiss == 0, sum_m0_wmiss + 1.0, sum_m0_wmiss)
        loss_miss = stats[3] / denom_miss

        # TODO(synk): loss_known, various_loss (RHOB_l/NPHI_l/DTC_l) and the
        # debug prints in the PyTorch forward never reach the returned value;
        # they are dead compute / side-effects and are omitted here.

        ssim_miss = 1.0 - stats[5]

        w2 = 0.25
        return loss_miss + 2.0 * w2 * mean_std_loss + ssim_miss


# ----------------------------------------------------------------------------
# Pure-JAX reference for verification.
# ----------------------------------------------------------------------------
def _conv_valid(img, win):
    out = jax.lax.conv_general_dilated(
        img[None, None, :, :], win[None, None, :, :], (1, 1), "VALID"
    )
    return out[0, 0]


def _ref_ssim(img1, img2, window):
    l_val = jnp.where(jnp.max(img1) > 128.0, 255.0, 1.0) - jnp.where(
        jnp.min(img1) < -0.5, -1.0, 0.0
    )
    c1 = (0.01 * l_val) ** 2
    c2 = (0.03 * l_val) ** 2
    mu1 = _conv_valid(img1, window)
    mu2 = _conv_valid(img2, window)
    mu1_sq, mu2_sq, mu1_mu2 = mu1 * mu1, mu2 * mu2, mu1 * mu2
    sigma1_sq = _conv_valid(img1 * img1, window) - mu1_sq
    sigma2_sq = _conv_valid(img2 * img2, window) - mu2_sq
    sigma12 = _conv_valid(img1 * img2, window) - mu1_mu2
    v1 = 2.0 * sigma12 + c2
    v2 = sigma1_sq + sigma2_sq + c2
    ssim_map = (2.0 * mu1_mu2 + c1) * v1 / ((mu1_sq + mu2_sq + c1) * v2)
    return jnp.mean(ssim_map)


def _reference_loss(x, y, mask0, maskd, y_mean, y_std, mean, std, window):
    y_mean, y_std = jnp.ravel(y_mean), jnp.ravel(y_std)
    mean, std = jnp.ravel(mean), jnp.ravel(std)
    head_m0 = jnp.where(jnp.sum(mask0, axis=1) > 0, 1.0, 0.0)
    head_md = jnp.where(jnp.sum(maskd, axis=1) > 0, 1.0, 0.0)
    head = head_m0 * (1.0 - head_md)
    sum_h = jnp.sum(head)
    denom_h = jnp.where(sum_h == 0, sum_h + 1.0, sum_h)
    mean_loss = jnp.sum(jnp.abs(y_mean - mean) * head) / denom_h
    std_loss = jnp.sum(jnp.abs(y_std - std) * head) / denom_h
    mean_std_loss = 4.0 * mean_loss + std_loss
    m = (x - y) ** 2
    lsms = m * mask0 * (1.0 - maskd)
    sum_w = jnp.sum(mask0 * (1.0 - maskd))
    denom_w = jnp.where(sum_w == 0, sum_w + 1.0, sum_w)
    loss_miss = jnp.sum(lsms) / denom_w
    img1 = x * mask0 * (1.0 - maskd)
    img2 = y * mask0 * (1.0 - maskd)
    ssim_miss = 1.0 - _ref_ssim(img1, img2, jnp.asarray(window))
    return loss_miss + 0.5 * mean_std_loss + ssim_miss


if __name__ == "__main__":
    key = jax.random.PRNGKey(0)
    fea_litho = ["GR", "RHOB", "NPHI", "DTC"]
    bsize = 4
    R = bsize * len(fea_litho)     # 16 rows
    L = 64                         # sequence length

    ks = jax.random.split(key, 8)
    x = jax.random.normal(ks[0], (R, L), jnp.float32)
    y = jax.random.normal(ks[1], (R, L), jnp.float32)
    y_ori = jax.random.normal(ks[2], (R, L), jnp.float32)
    mask0 = (jax.random.uniform(ks[3], (R, L)) > 0.2).astype(jnp.float32)
    maskd = (jax.random.uniform(ks[4], (R, L)) > 0.6).astype(jnp.float32)
    # make only odd rows contain a missing segment so head_m0_md is non-trivial
    maskd = maskd * (jnp.arange(R) % 2 == 1).astype(jnp.float32)[:, None]
    y_mean = jax.random.normal(ks[5], (R,), jnp.float32)
    y_std = jax.random.uniform(ks[6], (R,), jnp.float32) + 0.5
    mean = jax.random.normal(ks[7], (R,), jnp.float32)
    std = y_std + 0.1

    loss_fn = MyLossPallas(fea_litho, bsize)
    out = loss_fn(x, y, y_ori, mask0, maskd, y_mean, y_std, mean, std)
    out = jax.block_until_ready(out)

    ref = _reference_loss(x, y, mask0, maskd, y_mean, y_std, mean, std,
                          loss_fn.window)
    np.testing.assert_allclose(np.asarray(out), np.asarray(ref),
                               rtol=2e-3, atol=2e-3)
    print("KERNEL_OK")
</pallas_src>

<mosaic_0001>
module attributes {stable_mosaic.version = 11 : i64} {
  func.func @_fused_loss_kernel(%arg0: memref<16x64xf32, #tpu.memory_space<vmem>>, %arg1: memref<16x64xf32, #tpu.memory_space<vmem>>, %arg2: memref<16x64xf32, #tpu.memory_space<vmem>>, %arg3: memref<16x64xf32, #tpu.memory_space<vmem>>, %arg4: memref<16x1xf32, #tpu.memory_space<vmem>>, %arg5: memref<16x1xf32, #tpu.memory_space<vmem>>, %arg6: memref<16x1xf32, #tpu.memory_space<vmem>>, %arg7: memref<16x1xf32, #tpu.memory_space<vmem>>, %arg8: memref<8xf32, #tpu.memory_space<smem>>) attributes {dimension_semantics = [], scalar_prefetch = 0 : i64, scratch_operands = 0 : i64, tpu.core_type = #tpu.core_type<tc>} {
    %c0 = arith.constant 0 : index
    %c0_0 = arith.constant 0 : index
    %0 = vector.load %arg0[%c0, %c0_0] : memref<16x64xf32, #tpu.memory_space<vmem>>, vector<16x64xf32>
    %c0_1 = arith.constant 0 : index
    %c0_2 = arith.constant 0 : index
    %1 = vector.load %arg1[%c0_1, %c0_2] : memref<16x64xf32, #tpu.memory_space<vmem>>, vector<16x64xf32>
    %c0_3 = arith.constant 0 : index
    %c0_4 = arith.constant 0 : index
    %2 = vector.load %arg2[%c0_3, %c0_4] : memref<16x64xf32, #tpu.memory_space<vmem>>, vector<16x64xf32>
    %c0_5 = arith.constant 0 : index
    %c0_6 = arith.constant 0 : index
    %3 = vector.load %arg3[%c0_5, %c0_6] : memref<16x64xf32, #tpu.memory_space<vmem>>, vector<16x64xf32>
    %cst = arith.constant 1.000000e+00 : f32
    %4 = vector.broadcast %cst : f32 to vector<16x64xf32>
    %5 = arith.subf %4, %3 : vector<16x64xf32>
    %6 = arith.mulf %2, %5 : vector<16x64xf32>
    %7 = arith.subf %0, %1 : vector<16x64xf32>
    %8 = arith.mulf %7, %7 : vector<16x64xf32>
    %9 = arith.mulf %8, %6 : vector<16x64xf32>
    %cst_7 = arith.constant dense<0.000000e+00> : vector<16xf32>
    %10 = vector.multi_reduction <add>, %2, %cst_7 [1] : vector<16x64xf32> to vector<16xf32>
    %11 = vector.shape_cast %10 : vector<16xf32> to vector<16x1xf32>
    %cst_8 = arith.constant dense<0.000000e+00> : vector<16xf32>
    %12 = vector.multi_reduction <add>, %3, %cst_8 [1] : vector<16x64xf32> to vector<16xf32>
    %13 = vector.shape_cast %12 : vector<16xf32> to vector<16x1xf32>
    %cst_9 = arith.constant 0.000000e+00 : f32
    %14 = vector.broadcast %cst_9 : f32 to vector<16x1xf32>
    %15 = arith.cmpf ogt, %11, %14 : vector<16x1xf32>
    %cst_10 = arith.constant 1.000000e+00 : f32
    %cst_11 = arith.constant 0.000000e+00 : f32
    %16 = vector.broadcast %cst_10 : f32 to vector<16x1xf32>
    %17 = vector.broadcast %cst_11 : f32 to vector<16x1xf32>
    %18 = arith.select %15, %16, %17 : vector<16x1xi1>, vector<16x1xf32>
    %cst_12 = arith.constant 0.000000e+00 : f32
    %19 = vector.broadcast %cst_12 : f32 to vector<16x1xf32>
    %20 = arith.cmpf ogt, %13, %19 : vector<16x1xf32>
    %cst_13 = arith.constant 1.000000e+00 : f32
    %cst_14 = arith.constant 0.000000e+00 : f32
    %21 = vector.broadcast %cst_13 : f32 to vector<16x1xf32>
    %22 = vector.broadcast %cst_14 : f32 to vector<16x1xf32>
    %23 = arith.select %20, %21, %22 : vector<16x1xi1>, vector<16x1xf32>
    %cst_15 = arith.constant 1.000000e+00 : f32
    %24 = vector.broadcast %cst_15 : f32 to vector<16x1xf32>
    %25 = arith.subf %24, %23 : vector<16x1xf32>
    %26 = arith.mulf %18, %25 : vector<16x1xf32>
    %c0_16 = arith.constant 0 : index
    %c0_17 = arith.constant 0 : index
    %27 = vector.load %arg4[%c0_16, %c0_17] : memref<16x1xf32, #tpu.memory_space<vmem>>, vector<16x1xf32>
    %c0_18 = arith.constant 0 : index
    %c0_19 = arith.constant 0 : index
    %28 = vector.load %arg5[%c0_18, %c0_19] : memref<16x1xf32, #tpu.memory_space<vmem>>, vector<16x1xf32>
    %c0_20 = arith.constant 0 : index
    %c0_21 = arith.constant 0 : index
    %29 = vector.load %arg6[%c0_20, %c0_21] : memref<16x1xf32, #tpu.memory_space<vmem>>, vector<16x1xf32>
    %c0_22 = arith.constant 0 : index
    %c0_23 = arith.constant 0 : index
    %30 = vector.load %arg7[%c0_22, %c0_23] : memref<16x1xf32, #tpu.memory_space<vmem>>, vector<16x1xf32>
    %31 = vector.shape_cast %26 : vector<16x1xf32> to vector<1x16x1xf32>
    %cst_24 = arith.constant dense<0.000000e+00> : vector<1xf32>
    %32 = vector.multi_reduction <add>, %31, %cst_24 [1, 2] : vector<1x16x1xf32> to vector<1xf32>
    %33 = vector.shape_cast %32 : vector<1xf32> to vector<1x1x1xf32>
    %34 = vector.extract %33[0, 0, 0] : f32 from vector<1x1x1xf32>
    %c0_25 = arith.constant 0 : index
    %35 = memref.load %arg8[%c0_25] : memref<8xf32, #tpu.memory_space<smem>>
    memref.store %34, %arg8[%c0_25] : memref<8xf32, #tpu.memory_space<smem>>
    %36 = arith.subf %27, %29 : vector<16x1xf32>
    %37 = math.absf %36 : vector<16x1xf32>
    %38 = arith.mulf %37, %26 : vector<16x1xf32>
    %39 = vector.shape_cast %38 : vector<16x1xf32> to vector<1x16x1xf32>
    %cst_26 = arith.constant dense<0.000000e+00> : vector<1xf32>
    %40 = vector.multi_reduction <add>, %39, %cst_26 [1, 2] : vector<1x16x1xf32> to vector<1xf32>
    %41 = vector.shape_cast %40 : vector<1xf32> to vector<1x1x1xf32>
    %42 = vector.extract %41[0, 0, 0] : f32 from vector<1x1x1xf32>
    %c1 = arith.constant 1 : index
    %43 = memref.load %arg8[%c1] : memref<8xf32, #tpu.memory_space<smem>>
    memref.store %42, %arg8[%c1] : memref<8xf32, #tpu.memory_space<smem>>
    %44 = arith.subf %28, %30 : vector<16x1xf32>
    %45 = math.absf %44 : vector<16x1xf32>
    %46 = arith.mulf %45, %26 : vector<16x1xf32>
    %47 = vector.shape_cast %46 : vector<16x1xf32> to vector<1x16x1xf32>
    %cst_27 = arith.constant dense<0.000000e+00> : vector<1xf32>
    %48 = vector.multi_reduction <add>, %47, %cst_27 [1, 2] : vector<1x16x1xf32> to vector<1xf32>
    %49 = vector.shape_cast %48 : vector<1xf32> to vector<1x1x1xf32>
    %50 = vector.extract %49[0, 0, 0] : f32 from vector<1x1x1xf32>
    %c2 = arith.constant 2 : index
    %51 = memref.load %arg8[%c2] : memref<8xf32, #tpu.memory_space<smem>>
    memref.store %50, %arg8[%c2] : memref<8xf32, #tpu.memory_space<smem>>
    %52 = vector.shape_cast %9 : vector<16x64xf32> to vector<1x16x64xf32>
    %cst_28 = arith.constant dense<0.000000e+00> : vector<1xf32>
    %53 = vector.multi_reduction <add>, %52, %cst_28 [1, 2] : vector<1x16x64xf32> to vector<1xf32>
    %54 = vector.shape_cast %53 : vector<1xf32> to vector<1x1x1xf32>
    %55 = vector.extract %54[0, 0, 0] : f32 from vector<1x1x1xf32>
    %c3 = arith.constant 3 : index
    %56 = memref.load %arg8[%c3] : memref<8xf32, #tpu.memory_space<smem>>
    memref.store %55, %arg8[%c3] : memref<8xf32, #tpu.memory_space<smem>>
    %57 = vector.shape_cast %6 : vector<16x64xf32> to vector<1x16x64xf32>
    %cst_29 = arith.constant dense<0.000000e+00> : vector<1xf32>
    %58 = vector.multi_reduction <add>, %57, %cst_29 [1, 2] : vector<1x16x64xf32> to vector<1xf32>
    %59 = vector.shape_cast %58 : vector<1xf32> to vector<1x1x1xf32>
    %60 = vector.extract %59[0, 0, 0] : f32 from vector<1x1x1xf32>
    %c4 = arith.constant 4 : index
    %61 = memref.load %arg8[%c4] : memref<8xf32, #tpu.memory_space<smem>>
    memref.store %60, %arg8[%c4] : memref<8xf32, #tpu.memory_space<smem>>
    %62 = arith.mulf %0, %6 : vector<16x64xf32>
    %63 = arith.mulf %1, %6 : vector<16x64xf32>
    %64 = vector.shape_cast %62 : vector<16x64xf32> to vector<1x16x64xf32>
    %cst_30 = arith.constant dense<0xFF800000> : vector<1xf32>
    %65 = vector.multi_reduction <maximumf>, %64, %cst_30 [1, 2] : vector<1x16x64xf32> to vector<1xf32>
    %66 = vector.shape_cast %65 : vector<1xf32> to vector<1x1x1xf32>
    %67 = vector.extract %66[0, 0, 0] : f32 from vector<1x1x1xf32>
    %cst_31 = arith.constant 1.280000e+02 : f32
    %68 = arith.cmpf ogt, %67, %cst_31 : f32
    %cst_32 = arith.constant 2.550000e+02 : f32
    %cst_33 = arith.constant 1.000000e+00 : f32
    %69 = arith.select %68, %cst_32, %cst_33 : f32
    %70 = vector.shape_cast %62 : vector<16x64xf32> to vector<1x16x64xf32>
    %cst_34 = arith.constant dense<0x7F800000> : vector<1xf32>
    %71 = vector.multi_reduction <minimumf>, %70, %cst_34 [1, 2] : vector<1x16x64xf32> to vector<1xf32>
    %72 = vector.shape_cast %71 : vector<1xf32> to vector<1x1x1xf32>
    %73 = vector.extract %72[0, 0, 0] : f32 from vector<1x1x1xf32>
    %cst_35 = arith.constant -5.000000e-01 : f32
    %74 = arith.cmpf olt, %73, %cst_35 : f32
    %cst_36 = arith.constant -1.000000e+00 : f32
    %cst_37 = arith.constant 0.000000e+00 : f32
    %75 = arith.select %74, %cst_36, %cst_37 : f32
    %76 = arith.subf %69, %75 : f32
    %cst_38 = arith.constant 0.00999999977 : f32
    %77 = arith.mulf %cst_38, %76 : f32
    %78 = arith.mulf %77, %77 : f32
    %cst_39 = arith.constant 3.000000e-02 : f32
    %79 = arith.mulf %cst_39, %76 : f32
    %80 = arith.mulf %79, %79 : f32
    %81 = vector.extract_strided_slice %62 {offsets = [0, 0], sizes = [6, 64], strides = [1, 1]} : vector<16x64xf32> to vector<6x64xf32>
    %cst_40 = arith.constant 0.00102838024 : f32
    %82 = vector.broadcast %cst_40 : f32 to vector<6x64xf32>
    %83 = arith.mulf %82, %81 : vector<6x64xf32>
    %84 = vector.extract_strided_slice %62 {offsets = [1, 0], sizes = [6, 64], strides = [1, 1]} : vector<16x64xf32> to vector<6x64xf32>
    %cst_41 = arith.constant 0.00759875868 : f32
    %85 = vector.broadcast %cst_41 : f32 to vector<6x64xf32>
    %86 = arith.mulf %85, %84 : vector<6x64xf32>
    %87 = arith.addf %83, %86 : vector<6x64xf32>
    %88 = vector.extract_strided_slice %62 {offsets = [2, 0], sizes = [6, 64], strides = [1, 1]} : vector<16x64xf32> to vector<6x64xf32>
    %cst_42 = arith.constant 0.0360007733 : f32
    %89 = vector.broadcast %cst_42 : f32 to vector<6x64xf32>
    %90 = arith.mulf %89, %88 : vector<6x64xf32>
    %91 = arith.addf %87, %90 : vector<6x64xf32>
    %92 = vector.extract_strided_slice %62 {offsets = [3, 0], sizes = [6, 64], strides = [1, 1]} : vector<16x64xf32> to vector<6x64xf32>
    %cst_43 = arith.constant 0.109360695 : f32
    %93 = vector.broadcast %cst_43 : f32 to vector<6x64xf32>
    %94 = arith.mulf %93, %92 : vector<6x64xf32>
    %95 = arith.addf %91, %94 : vector<6x64xf32>
    %96 = vector.extract_strided_slice %62 {offsets = [4, 0], sizes = [6, 64], strides = [1, 1]} : vector<16x64xf32> to vector<6x64xf32>
    %cst_44 = arith.constant 0.213005543 : f32
    %97 = vector.broadcast %cst_44 : f32 to vector<6x64xf32>
    %98 = arith.mulf %97, %96 : vector<6x64xf32>
    %99 = arith.addf %95, %98 : vector<6x64xf32>
    %100 = vector.extract_strided_slice %62 {offsets = [5, 0], sizes = [6, 64], strides = [1, 1]} : vector<16x64xf32> to vector<6x64xf32>
    %cst_45 = arith.constant 0.266011745 : f32
    %101 = vector.broadcast %cst_45 : f32 to vector<6x64xf32>
    %102 = arith.mulf %101, %100 : vector<6x64xf32>
    %103 = arith.addf %99, %102 : vector<6x64xf32>
    %104 = vector.extract_strided_slice %62 {offsets = [6, 0], sizes = [6, 64], strides = [1, 1]} : vector<16x64xf32> to vector<6x64xf32>
    %cst_46 = arith.constant 0.213005543 : f32
    %105 = vector.broadcast %cst_46 : f32 to vector<6x64xf32>
    %106 = arith.mulf %105, %104 : vector<6x64xf32>
    %107 = arith.addf %103, %106 : vector<6x64xf32>
    %108 = vector.extract_strided_slice %62 {offsets = [7, 0], sizes = [6, 64], strides = [1, 1]} : vector<16x64xf32> to vector<6x64xf32>
    %cst_47 = arith.constant 0.109360695 : f32
    %109 = vector.broadcast %cst_47 : f32 to vector<6x64xf32>
    %110 = arith.mulf %109, %108 : vector<6x64xf32>
    %111 = arith.addf %107, %110 : vector<6x64xf32>
    %112 = vector.extract_strided_slice %62 {offsets = [8, 0], sizes = [6, 64], strides = [1, 1]} : vector<16x64xf32> to vector<6x64xf32>
    %cst_48 = arith.constant 0.0360007733 : f32
    %113 = vector.broadcast %cst_48 : f32 to vector<6x64xf32>
    %114 = arith.mulf %113, %112 : vector<6x64xf32>
    %115 = arith.addf %111, %114 : vector<6x64xf32>
    %116 = vector.extract_strided_slice %62 {offsets = [9, 0], sizes = [6, 64], strides = [1, 1]} : vector<16x64xf32> to vector<6x64xf32>
    %cst_49 = arith.constant 0.00759875868 : f32
    %117 = vector.broadcast %cst_49 : f32 to vector<6x64xf32>
    %118 = arith.mulf %117, %116 : vector<6x64xf32>
    %119 = arith.addf %115, %118 : vector<6x64xf32>
    %120 = vector.extract_strided_slice %62 {offsets = [10, 0], sizes = [6, 64], strides = [1, 1]} : vector<16x64xf32> to vector<6x64xf32>
    %cst_50 = arith.constant 0.00102838024 : f32
    %121 = vector.broadcast %cst_50 : f32 to vector<6x64xf32>
    %122 = arith.mulf %121, %120 : vector<6x64xf32>
    %123 = arith.addf %119, %122 : vector<6x64xf32>
    %124 = vector.extract_strided_slice %123 {offsets = [0, 0], sizes = [6, 54], strides = [1, 1]} : vector<6x64xf32> to vector<6x54xf32>
    %cst_51 = arith.constant 0.00102838024 : f32
    %125 = vector.broadcast %cst_51 : f32 to vector<6x54xf32>
    %126 = arith.mulf %125, %124 : vector<6x54xf32>
    %127 = vector.extract_strided_slice %123 {offsets = [0, 1], sizes = [6, 54], strides = [1, 1]} : vector<6x64xf32> to vector<6x54xf32>
    %cst_52 = arith.constant 0.00759875868 : f32
    %128 = vector.broadcast %cst_52 : f32 to vector<6x54xf32>
    %129 = arith.mulf %128, %127 : vector<6x54xf32>
    %130 = arith.addf %126, %129 : vector<6x54xf32>
    %131 = vector.extract_strided_slice %123 {offsets = [0, 2], sizes = [6, 54], strides = [1, 1]} : vector<6x64xf32> to vector<6x54xf32>
    %cst_53 = arith.constant 0.0360007733 : f32
    %132 = vector.broadcast %cst_53 : f32 to vector<6x54xf32>
    %133 = arith.mulf %132, %131 : vector<6x54xf32>
    %134 = arith.addf %130, %133 : vector<6x54xf32>
    %135 = vector.extract_strided_slice %123 {offsets = [0, 3], sizes = [6, 54], strides = [1, 1]} : vector<6x64xf32> to vector<6x54xf32>
    %cst_54 = arith.constant 0.109360695 : f32
    %136 = vector.broadcast %cst_54 : f32 to vector<6x54xf32>
    %137 = arith.mulf %136, %135 : vector<6x54xf32>
    %138 = arith.addf %134, %137 : vector<6x54xf32>
    %139 = vector.extract_strided_slice %123 {offsets = [0, 4], sizes = [6, 54], strides = [1, 1]} : vector<6x64xf32> to vector<6x54xf32>
    %cst_55 = arith.constant 0.213005543 : f32
    %140 = vector.broadcast %cst_55 : f32 to vector<6x54xf32>
    %141 = arith.mulf %140, %139 : vector<6x54xf32>
    %142 = arith.addf %138, %141 : vector<6x54xf32>
    %143 = vector.extract_strided_slice %123 {offsets = [0, 5], sizes = [6, 54], strides = [1, 1]} : vector<6x64xf32> to vector<6x54xf32>
    %cst_56 = arith.constant 0.266011745 : f32
    %144 = vector.broadcast %cst_56 : f32 to vector<6x54xf32>
    %145 = arith.mulf %144, %143 : vector<6x54xf32>
    %146 = arith.addf %142, %145 : vector<6x54xf32>
    %147 = vector.extract_strided_slice %123 {offsets = [0, 6], sizes = [6, 54], strides = [1, 1]} : vector<6x64xf32> to vector<6x54xf32>
    %cst_57 = arith.constant 0.213005543 : f32
    %148 = vector.broadcast %cst_57 : f32 to vector<6x54xf32>
    %149 = arith.mulf %148, %147 : vector<6x54xf32>
    %150 = arith.addf %146, %149 : vector<6x54xf32>
    %151 = vector.extract_strided_slice %123 {offsets = [0, 7], sizes = [6, 54], strides = [1, 1]} : vector<6x64xf32> to vector<6x54xf32>
    %cst_58 = arith.constant 0.109360695 : f32
    %152 = vector.broadcast %cst_58 : f32 to vector<6x54xf32>
    %153 = arith.mulf %152, %151 : vector<6x54xf32>
    %154 = arith.addf %150, %153 : vector<6x54xf32>
    %155 = vector.extract_strided_slice %123 {offsets = [0, 8], sizes = [6, 54], strides = [1, 1]} : vector<6x64xf32> to vector<6x54xf32>
    %cst_59 = arith.constant 0.0360007733 : f32
    %156 = vector.broadcast %cst_59 : f32 to vector<6x54xf32>
    %157 = arith.mulf %156, %155 : vector<6x54xf32>
    %158 = arith.addf %154, %157 : vector<6x54xf32>
    %159 = vector.extract_strided_slice %123 {offsets = [0, 9], sizes = [6, 54], strides = [1, 1]} : vector<6x64xf32> to vector<6x54xf32>
    %cst_60 = arith.constant 0.00759875868 : f32
    %160 = vector.broadcast %cst_60 : f32 to vector<6x54xf32>
    %161 = arith.mulf %160, %159 : vector<6x54xf32>
    %162 = arith.addf %158, %161 : vector<6x54xf32>
    %163 = vector.extract_strided_slice %123 {offsets = [0, 10], sizes = [6, 54], strides = [1, 1]} : vector<6x64xf32> to vector<6x54xf32>
    %cst_61 = arith.constant 0.00102838024 : f32
    %164 = vector.broadcast %cst_61 : f32 to vector<6x54xf32>
    %165 = arith.mulf %164, %163 : vector<6x54xf32>
    %166 = arith.addf %162, %165 : vector<6x54xf32>
    %167 = vector.extract_strided_slice %63 {offsets = [0, 0], sizes = [6, 64], strides = [1, 1]} : vector<16x64xf32> to vector<6x64xf32>
    %cst_62 = arith.constant 0.00102838024 : f32
    %168 = vector.broadcast %cst_62 : f32 to vector<6x64xf32>
    %169 = arith.mulf %168, %167 : vector<6x64xf32>
    %170 = vector.extract_strided_slice %63 {offsets = [1, 0], sizes = [6, 64], strides = [1, 1]} : vector<16x64xf32> to vector<6x64xf32>
    %cst_63 = arith.constant 0.00759875868 : f32
    %171 = vector.broadcast %cst_63 : f32 to vector<6x64xf32>
    %172 = arith.mulf %171, %170 : vector<6x64xf32>
    %173 = arith.addf %169, %172 : vector<6x64xf32>
    %174 = vector.extract_strided_slice %63 {offsets = [2, 0], sizes = [6, 64], strides = [1, 1]} : vector<16x64xf32> to vector<6x64xf32>
    %cst_64 = arith.constant 0.0360007733 : f32
    %175 = vector.broadcast %cst_64 : f32 to vector<6x64xf32>
    %176 = arith.mulf %175, %174 : vector<6x64xf32>
    %177 = arith.addf %173, %176 : vector<6x64xf32>
    %178 = vector.extract_strided_slice %63 {offsets = [3, 0], sizes = [6, 64], strides = [1, 1]} : vector<16x64xf32> to vector<6x64xf32>
    %cst_65 = arith.constant 0.109360695 : f32
    %179 = vector.broadcast %cst_65 : f32 to vector<6x64xf32>
    %180 = arith.mulf %179, %178 : vector<6x64xf32>
    %181 = arith.addf %177, %180 : vector<6x64xf32>
    %182 = vector.extract_strided_slice %63 {offsets = [4, 0], sizes = [6, 64], strides = [1, 1]} : vector<16x64xf32> to vector<6x64xf32>
    %cst_66 = arith.constant 0.213005543 : f32
    %183 = vector.broadcast %cst_66 : f32 to vector<6x64xf32>
    %184 = arith.mulf %183, %182 : vector<6x64xf32>
    %185 = arith.addf %181, %184 : vector<6x64xf32>
    %186 = vector.extract_strided_slice %63 {offsets = [5, 0], sizes = [6, 64], strides = [1, 1]} : vector<16x64xf32> to vector<6x64xf32>
    %cst_67 = arith.constant 0.266011745 : f32
    %187 = vector.broadcast %cst_67 : f32 to vector<6x64xf32>
    %188 = arith.mulf %187, %186 : vector<6x64xf32>
    %189 = arith.addf %185, %188 : vector<6x64xf32>
    %190 = vector.extract_strided_slice %63 {offsets = [6, 0], sizes = [6, 64], strides = [1, 1]} : vector<16x64xf32> to vector<6x64xf32>
    %cst_68 = arith.constant 0.213005543 : f32
    %191 = vector.broadcast %cst_68 : f32 to vector<6x64xf32>
    %192 = arith.mulf %191, %190 : vector<6x64xf32>
    %193 = arith.addf %189, %192 : vector<6x64xf32>
    %194 = vector.extract_strided_slice %63 {offsets = [7, 0], sizes = [6, 64], strides = [1, 1]} : vector<16x64xf32> to vector<6x64xf32>
    %cst_69 = arith.constant 0.109360695 : f32
    %195 = vector.broadcast %cst_69 : f32 to vector<6x64xf32>
    %196 = arith.mulf %195, %194 : vector<6x64xf32>
    %197 = arith.addf %193, %196 : vector<6x64xf32>
    %198 = vector.extract_strided_slice %63 {offsets = [8, 0], sizes = [6, 64], strides = [1, 1]} : vector<16x64xf32> to vector<6x64xf32>
    %cst_70 = arith.constant 0.0360007733 : f32
    %199 = vector.broadcast %cst_70 : f32 to vector<6x64xf32>
    %200 = arith.mulf %199, %198 : vector<6x64xf32>
    %201 = arith.addf %197, %200 : vector<6x64xf32>
    %202 = vector.extract_strided_slice %63 {offsets = [9, 0], sizes = [6, 64], strides = [1, 1]} : vector<16x64xf32> to vector<6x64xf32>
    %cst_71 = arith.constant 0.00759875868 : f32
    %203 = vector.broadcast %cst_71 : f32 to vector<6x64xf32>
    %204 = arith.mulf %203, %202 : vector<6x64xf32>
    %205 = arith.addf %201, %204 : vector<6x64xf32>
    %206 = vector.extract_strided_slice %63 {offsets = [10, 0], sizes = [6, 64], strides = [1, 1]} : vector<16x64xf32> to vector<6x64xf32>
    %cst_72 = arith.constant 0.00102838024 : f32
    %207 = vector.broadcast %cst_72 : f32 to vector<6x64xf32>
    %208 = arith.mulf %207, %206 : vector<6x64xf32>
    %209 = arith.addf %205, %208 : vector<6x64xf32>
    %210 = vector.extract_strided_slice %209 {offsets = [0, 0], sizes = [6, 54], strides = [1, 1]} : vector<6x64xf32> to vector<6x54xf32>
    %cst_73 = arith.constant 0.00102838024 : f32
    %211 = vector.broadcast %cst_73 : f32 to vector<6x54xf32>
    %212 = arith.mulf %211, %210 : vector<6x54xf32>
    %213 = vector.extract_strided_slice %209 {offsets = [0, 1], sizes = [6, 54], strides = [1, 1]} : vector<6x64xf32> to vector<6x54xf32>
    %cst_74 = arith.constant 0.00759875868 : f32
    %214 = vector.broadcast %cst_74 : f32 to vector<6x54xf32>
    %215 = arith.mulf %214, %213 : vector<6x54xf32>
    %216 = arith.addf %212, %215 : vector<6x54xf32>
    %217 = vector.extract_strided_slice %209 {offsets = [0, 2], sizes = [6, 54], strides = [1, 1]} : vector<6x64xf32> to vector<6x54xf32>
    %cst_75 = arith.constant 0.0360007733 : f32
    %218 = vector.broadcast %cst_75 : f32 to vector<6x54xf32>
    %219 = arith.mulf %218, %217 : vector<6x54xf32>
    %220 = arith.addf %216, %219 : vector<6x54xf32>
    %221 = vector.extract_strided_slice %209 {offsets = [0, 3], sizes = [6, 54], strides = [1, 1]} : vector<6x64xf32> to vector<6x54xf32>
    %cst_76 = arith.constant 0.109360695 : f32
    %222 = vector.broadcast %cst_76 : f32 to vector<6x54xf32>
    %223 = arith.mulf %222, %221 : vector<6x54xf32>
    %224 = arith.addf %220, %223 : vector<6x54xf32>
    %225 = vector.extract_strided_slice %209 {offsets = [0, 4], sizes = [6, 54], strides = [1, 1]} : vector<6x64xf32> to vector<6x54xf32>
    %cst_77 = arith.constant 0.213005543 : f32
    %226 = vector.broadcast %cst_77 : f32 to vector<6x54xf32>
    %227 = arith.mulf %226, %225 : vector<6x54xf32>
    %228 = arith.addf %224, %227 : vector<6x54xf32>
    %229 = vector.extract_strided_slice %209 {offsets = [0, 5], sizes = [6, 54], strides = [1, 1]} : vector<6x64xf32> to vector<6x54xf32>
    %cst_78 = arith.constant 0.266011745 : f32
    %230 = vector.broadcast %cst_78 : f32 to vector<6x54xf32>
    %231 = arith.mulf %230, %229 : vector<6x54xf32>
    %232 = arith.addf %228, %231 : vector<6x54xf32>
    %233 = vector.extract_strided_slice %209 {offsets = [0, 6], sizes = [6, 54], strides = [1, 1]} : vector<6x64xf32> to vector<6x54xf32>
    %cst_79 = arith.constant 0.213005543 : f32
    %234 = vector.broadcast %cst_79 : f32 to vector<6x54xf32>
    %235 = arith.mulf %234, %233 : vector<6x54xf32>
    %236 = arith.addf %232, %235 : vector<6x54xf32>
    %237 = vector.extract_strided_slice %209 {offsets = [0, 7], sizes = [6, 54], strides = [1, 1]} : vector<6x64xf32> to vector<6x54xf32>
    %cst_80 = arith.constant 0.109360695 : f32
    %238 = vector.broadcast %cst_80 : f32 to vector<6x54xf32>
    %239 = arith.mulf %238, %237 : vector<6x54xf32>
    %240 = arith.addf %236, %239 : vector<6x54xf32>
    %241 = vector.extract_strided_slice %209 {offsets = [0, 8], sizes = [6, 54], strides = [1, 1]} : vector<6x64xf32> to vector<6x54xf32>
    %cst_81 = arith.constant 0.0360007733 : f32
    %242 = vector.broadcast %cst_81 : f32 to vector<6x54xf32>
    %243 = arith.mulf %242, %241 : vector<6x54xf32>
    %244 = arith.addf %240, %243 : vector<6x54xf32>
    %245 = vector.extract_strided_slice %209 {offsets = [0, 9], sizes = [6, 54], strides = [1, 1]} : vector<6x64xf32> to vector<6x54xf32>
    %cst_82 = arith.constant 0.00759875868 : f32
    %246 = vector.broadcast %cst_82 : f32 to vector<6x54xf32>
    %247 = arith.mulf %246, %245 : vector<6x54xf32>
    %248 = arith.addf %244, %247 : vector<6x54xf32>
    %249 = vector.extract_strided_slice %209 {offsets = [0, 10], sizes = [6, 54], strides = [1, 1]} : vector<6x64xf32> to vector<6x54xf32>
    %cst_83 = arith.constant 0.00102838024 : f32
    %250 = vector.broadcast %cst_83 : f32 to vector<6x54xf32>
    %251 = arith.mulf %250, %249 : vector<6x54xf32>
    %252 = arith.addf %248, %251 : vector<6x54xf32>
    %253 = arith.mulf %62, %62 : vector<16x64xf32>
    %254 = vector.extract_strided_slice %253 {offsets = [0, 0], sizes = [6, 64], strides = [1, 1]} : vector<16x64xf32> to vector<6x64xf32>
    %cst_84 = arith.constant 0.00102838024 : f32
    %255 = vector.broadcast %cst_84 : f32 to vector<6x64xf32>
    %256 = arith.mulf %255, %254 : vector<6x64xf32>
    %257 = vector.extract_strided_slice %253 {offsets = [1, 0], sizes = [6, 64], strides = [1, 1]} : vector<16x64xf32> to vector<6x64xf32>
    %cst_85 = arith.constant 0.00759875868 : f32
    %258 = vector.broadcast %cst_85 : f32 to vector<6x64xf32>
    %259 = arith.mulf %258, %257 : vector<6x64xf32>
    %260 = arith.addf %256, %259 : vector<6x64xf32>
    %261 = vector.extract_strided_slice %253 {offsets = [2, 0], sizes = [6, 64], strides = [1, 1]} : vector<16x64xf32> to vector<6x64xf32>
    %cst_86 = arith.constant 0.0360007733 : f32
    %262 = vector.broadcast %cst_86 : f32 to vector<6x64xf32>
    %263 = arith.mulf %262, %261 : vector<6x64xf32>
    %264 = arith.addf %260, %263 : vector<6x64xf32>
    %265 = vector.extract_strided_slice %253 {offsets = [3, 0], sizes = [6, 64], strides = [1, 1]} : vector<16x64xf32> to vector<6x64xf32>
    %cst_87 = arith.constant 0.109360695 : f32
    %266 = vector.broadcast %cst_87 : f32 to vector<6x64xf32>
    %267 = arith.mulf %266, %265 : vector<6x64xf32>
    %268 = arith.addf %264, %267 : vector<6x64xf32>
    %269 = vector.extract_strided_slice %253 {offsets = [4, 0], sizes = [6, 64], strides = [1, 1]} : vector<16x64xf32> to vector<6x64xf32>
    %cst_88 = arith.constant 0.213005543 : f32
    %270 = vector.broadcast %cst_88 : f32 to vector<6x64xf32>
    %271 = arith.mulf %270, %269 : vector<6x64xf32>
    %272 = arith.addf %268, %271 : vector<6x64xf32>
    %273 = vector.extract_strided_slice %253 {offsets = [5, 0], sizes = [6, 64], strides = [1, 1]} : vector<16x64xf32> to vector<6x64xf32>
    %cst_89 = arith.constant 0.266011745 : f32
    %274 = vector.broadcast %cst_89 : f32 to vector<6x64xf32>
    %275 = arith.mulf %274, %273 : vector<6x64xf32>
    %276 = arith.addf %272, %275 : vector<6x64xf32>
    %277 = vector.extract_strided_slice %253 {offsets = [6, 0], sizes = [6, 64], strides = [1, 1]} : vector<16x64xf32> to vector<6x64xf32>
    %cst_90 = arith.constant 0.213005543 : f32
    %278 = vector.broadcast %cst_90 : f32 to vector<6x64xf32>
    %279 = arith.mulf %278, %277 : vector<6x64xf32>
    %280 = arith.addf %276, %279 : vector<6x64xf32>
    %281 = vector.extract_strided_slice %253 {offsets = [7, 0], sizes = [6, 64], strides = [1, 1]} : vector<16x64xf32> to vector<6x64xf32>
    %cst_91 = arith.constant 0.109360695 : f32
    %282 = vector.broadcast %cst_91 : f32 to vector<6x64xf32>
    %283 = arith.mulf %282, %281 : vector<6x64xf32>
    %284 = arith.addf %280, %283 : vector<6x64xf32>
    %285 = vector.extract_strided_slice %253 {offsets = [8, 0], sizes = [6, 64], strides = [1, 1]} : vector<16x64xf32> to vector<6x64xf32>
    %cst_92 = arith.constant 0.0360007733 : f32
    %286 = vector.broadcast %cst_92 : f32 to vector<6x64xf32>
    %287 = arith.mulf %286, %285 : vector<6x64xf32>
    %288 = arith.addf %284, %287 : vector<6x64xf32>
    %289 = vector.extract_strided_slice %253 {offsets = [9, 0], sizes = [6, 64], strides = [1, 1]} : vector<16x64xf32> to vector<6x64xf32>
    %cst_93 = arith.constant 0.00759875868 : f32
    %290 = vector.broadcast %cst_93 : f32 to vector<6x64xf32>
    %291 = arith.mulf %290, %289 : vector<6x64xf32>
    %292 = arith.addf %288, %291 : vector<6x64xf32>
    %293 = vector.extract_strided_slice %253 {offsets = [10, 0], sizes = [6, 64], strides = [1, 1]} : vector<16x64xf32> to vector<6x64xf32>
    %cst_94 = arith.constant 0.00102838024 : f32
    %294 = vector.broadcast %cst_94 : f32 to vector<6x64xf32>
    %295 = arith.mulf %294, %293 : vector<6x64xf32>
    %296 = arith.addf %292, %295 : vector<6x64xf32>
    %297 = vector.extract_strided_slice %296 {offsets = [0, 0], sizes = [6, 54], strides = [1, 1]} : vector<6x64xf32> to vector<6x54xf32>
    %cst_95 = arith.constant 0.00102838024 : f32
    %298 = vector.broadcast %cst_95 : f32 to vector<6x54xf32>
    %299 = arith.mulf %298, %297 : vector<6x54xf32>
    %300 = vector.extract_strided_slice %296 {offsets = [0, 1], sizes = [6, 54], strides = [1, 1]} : vector<6x64xf32> to vector<6x54xf32>
    %cst_96 = arith.constant 0.00759875868 : f32
    %301 = vector.broadcast %cst_96 : f32 to vector<6x54xf32>
    %302 = arith.mulf %301, %300 : vector<6x54xf32>
    %303 = arith.addf %299, %302 : vector<6x54xf32>
    %304 = vector.extract_strided_slice %296 {offsets = [0, 2], sizes = [6, 54], strides = [1, 1]} : vector<6x64xf32> to vector<6x54xf32>
    %cst_97 = arith.constant 0.0360007733 : f32
    %305 = vector.broadcast %cst_97 : f32 to vector<6x54xf32>
    %306 = arith.mulf %305, %304 : vector<6x54xf32>
    %307 = arith.addf %303, %306 : vector<6x54xf32>
    %308 = vector.extract_strided_slice %296 {offsets = [0, 3], sizes = [6, 54], strides = [1, 1]} : vector<6x64xf32> to vector<6x54xf32>
    %cst_98 = arith.constant 0.109360695 : f32
    %309 = vector.broadcast %cst_98 : f32 to vector<6x54xf32>
    %310 = arith.mulf %309, %308 : vector<6x54xf32>
    %311 = arith.addf %307, %310 : vector<6x54xf32>
    %312 = vector.extract_strided_slice %296 {offsets = [0, 4], sizes = [6, 54], strides = [1, 1]} : vector<6x64xf32> to vector<6x54xf32>
    %cst_99 = arith.constant 0.213005543 : f32
    %313 = vector.broadcast %cst_99 : f32 to vector<6x54xf32>
    %314 = arith.mulf %313, %312 : vector<6x54xf32>
    %315 = arith.addf %311, %314 : vector<6x54xf32>
    %316 = vector.extract_strided_slice %296 {offsets = [0, 5], sizes = [6, 54], strides = [1, 1]} : vector<6x64xf32> to vector<6x54xf32>
    %cst_100 = arith.constant 0.266011745 : f32
    %317 = vector.broadcast %cst_100 : f32 to vector<6x54xf32>
    %318 = arith.mulf %317, %316 : vector<6x54xf32>
    %319 = arith.addf %315, %318 : vector<6x54xf32>
    %320 = vector.extract_strided_slice %296 {offsets = [0, 6], sizes = [6, 54], strides = [1, 1]} : vector<6x64xf32> to vector<6x54xf32>
    %cst_101 = arith.constant 0.213005543 : f32
    %321 = vector.broadcast %cst_101 : f32 to vector<6x54xf32>
    %322 = arith.mulf %321, %320 : vector<6x54xf32>
    %323 = arith.addf %319, %322 : vector<6x54xf32>
    %324 = vector.extract_strided_slice %296 {offsets = [0, 7], sizes = [6, 54], strides = [1, 1]} : vector<6x64xf32> to vector<6x54xf32>
    %cst_102 = arith.constant 0.109360695 : f32
    %325 = vector.broadcast %cst_102 : f32 to vector<6x54xf32>
    %326 = arith.mulf %325, %324 : vector<6x54xf32>
    %327 = arith.addf %323, %326 : vector<6x54xf32>
    %328 = vector.extract_strided_slice %296 {offsets = [0, 8], sizes = [6, 54], strides = [1, 1]} : vector<6x64xf32> to vector<6x54xf32>
    %cst_103 = arith.constant 0.0360007733 : f32
    %329 = vector.broadcast %cst_103 : f32 to vector<6x54xf32>
    %330 = arith.mulf %329, %328 : vector<6x54xf32>
    %331 = arith.addf %327, %330 : vector<6x54xf32>
    %332 = vector.extract_strided_slice %296 {offsets = [0, 9], sizes = [6, 54], strides = [1, 1]} : vector<6x64xf32> to vector<6x54xf32>
    %cst_104 = arith.constant 0.00759875868 : f32
    %333 = vector.broadcast %cst_104 : f32 to vector<6x54xf32>
    %334 = arith.mulf %333, %332 : vector<6x54xf32>
    %335 = arith.addf %331, %334 : vector<6x54xf32>
    %336 = vector.extract_strided_slice %296 {offsets = [0, 10], sizes = [6, 54], strides = [1, 1]} : vector<6x64xf32> to vector<6x54xf32>
    %cst_105 = arith.constant 0.00102838024 : f32
    %337 = vector.broadcast %cst_105 : f32 to vector<6x54xf32>
    %338 = arith.mulf %337, %336 : vector<6x54xf32>
    %339 = arith.addf %335, %338 : vector<6x54xf32>
    %340 = arith.mulf %63, %63 : vector<16x64xf32>
    %341 = vector.extract_strided_slice %340 {offsets = [0, 0], sizes = [6, 64], strides = [1, 1]} : vector<16x64xf32> to vector<6x64xf32>
    %cst_106 = arith.constant 0.00102838024 : f32
    %342 = vector.broadcast %cst_106 : f32 to vector<6x64xf32>
    %343 = arith.mulf %342, %341 : vector<6x64xf32>
    %344 = vector.extract_strided_slice %340 {offsets = [1, 0], sizes = [6, 64], strides = [1, 1]} : vector<16x64xf32> to vector<6x64xf32>
    %cst_107 = arith.constant 0.00759875868 : f32
    %345 = vector.broadcast %cst_107 : f32 to vector<6x64xf32>
    %346 = arith.mulf %345, %344 : vector<6x64xf32>
    %347 = arith.addf %343, %346 : vector<6x64xf32>
    %348 = vector.extract_strided_slice %340 {offsets = [2, 0], sizes = [6, 64], strides = [1, 1]} : vector<16x64xf32> to vector<6x64xf32>
    %cst_108 = arith.constant 0.0360007733 : f32
    %349 = vector.broadcast %cst_108 : f32 to vector<6x64xf32>
    %350 = arith.mulf %349, %348 : vector<6x64xf32>
    %351 = arith.addf %347, %350 : vector<6x64xf32>
    %352 = vector.extract_strided_slice %340 {offsets = [3, 0], sizes = [6, 64], strides = [1, 1]} : vector<16x64xf32> to vector<6x64xf32>
    %cst_109 = arith.constant 0.109360695 : f32
    %353 = vector.broadcast %cst_109 : f32 to vector<6x64xf32>
    %354 = arith.mulf %353, %352 : vector<6x64xf32>
    %355 = arith.addf %351, %354 : vector<6x64xf32>
    %356 = vector.extract_strided_slice %340 {offsets = [4, 0], sizes = [6, 64], strides = [1, 1]} : vector<16x64xf32> to vector<6x64xf32>
    %cst_110 = arith.constant 0.213005543 : f32
    %357 = vector.broadcast %cst_110 : f32 to vector<6x64xf32>
    %358 = arith.mulf %357, %356 : vector<6x64xf32>
    %359 = arith.addf %355, %358 : vector<6x64xf32>
    %360 = vector.extract_strided_slice %340 {offsets = [5, 0], sizes = [6, 64], strides = [1, 1]} : vector<16x64xf32> to vector<6x64xf32>
    %cst_111 = arith.constant 0.266011745 : f32
    %361 = vector.broadcast %cst_111 : f32 to vector<6x64xf32>
    %362 = arith.mulf %361, %360 : vector<6x64xf32>
    %363 = arith.addf %359, %362 : vector<6x64xf32>
    %364 = vector.extract_strided_slice %340 {offsets = [6, 0], sizes = [6, 64], strides = [1, 1]} : vector<16x64xf32> to vector<6x64xf32>
    %cst_112 = arith.constant 0.213005543 : f32
    %365 = vector.broadcast %cst_112 : f32 to vector<6x64xf32>
    %366 = arith.mulf %365, %364 : vector<6x64xf32>
    %367 = arith.addf %363, %366 : vector<6x64xf32>
    %368 = vector.extract_strided_slice %340 {offsets = [7, 0], sizes = [6, 64], strides = [1, 1]} : vector<16x64xf32> to vector<6x64xf32>
    %cst_113 = arith.constant 0.109360695 : f32
    %369 = vector.broadcast %cst_113 : f32 to vector<6x64xf32>
    %370 = arith.mulf %369, %368 : vector<6x64xf32>
    %371 = arith.addf %367, %370 : vector<6x64xf32>
    %372 = vector.extract_strided_slice %340 {offsets = [8, 0], sizes = [6, 64], strides = [1, 1]} : vector<16x64xf32> to vector<6x64xf32>
    %cst_114 = arith.constant 0.0360007733 : f32
    %373 = vector.broadcast %cst_114 : f32 to vector<6x64xf32>
    %374 = arith.mulf %373, %372 : vector<6x64xf32>
    %375 = arith.addf %371, %374 : vector<6x64xf32>
    %376 = vector.extract_strided_slice %340 {offsets = [9, 0], sizes = [6, 64], strides = [1, 1]} : vector<16x64xf32> to vector<6x64xf32>
    %cst_115 = arith.constant 0.00759875868 : f32
    %377 = vector.broadcast %cst_115 : f32 to vector<6x64xf32>
    %378 = arith.mulf %377, %376 : vector<6x64xf32>
    %379 = arith.addf %375, %378 : vector<6x64xf32>
    %380 = vector.extract_strided_slice %340 {offsets = [10, 0], sizes = [6, 64], strides = [1, 1]} : vector<16x64xf32> to vector<6x64xf32>
    %cst_116 = arith.constant 0.00102838024 : f32
    %381 = vector.broadcast %cst_116 : f32 to vector<6x64xf32>
    %382 = arith.mulf %381, %380 : vector<6x64xf32>
    %383 = arith.addf %379, %382 : vector<6x64xf32>
    %384 = vector.extract_strided_slice %383 {offsets = [0, 0], sizes = [6, 54], strides = [1, 1]} : vector<6x64xf32> to vector<6x54xf32>
    %cst_117 = arith.constant 0.00102838024 : f32
    %385 = vector.broadcast %cst_117 : f32 to vector<6x54xf32>
    %386 = arith.mulf %385, %384 : vector<6x54xf32>
    %387 = vector.extract_strided_slice %383 {offsets = [0, 1], sizes = [6, 54], strides = [1, 1]} : vector<6x64xf32> to vector<6x54xf32>
    %cst_118 = arith.constant 0.00759875868 : f32
    %388 = vector.broadcast %cst_118 : f32 to vector<6x54xf32>
    %389 = arith.mulf %388, %387 : vector<6x54xf32>
    %390 = arith.addf %386, %389 : vector<6x54xf32>
    %391 = vector.extract_strided_slice %383 {offsets = [0, 2], sizes = [6, 54], strides = [1, 1]} : vector<6x64xf32> to vector<6x54xf32>
    %cst_119 = arith.constant 0.0360007733 : f32
    %392 = vector.broadcast %cst_119 : f32 to vector<6x54xf32>
    %393 = arith.mulf %392, %391 : vector<6x54xf32>
    %394 = arith.addf %390, %393 : vector<6x54xf32>
    %395 = vector.extract_strided_slice %383 {offsets = [0, 3], sizes = [6, 54], strides = [1, 1]} : vector<6x64xf32> to vector<6x54xf32>
    %cst_120 = arith.constant 0.109360695 : f32
    %396 = vector.broadcast %cst_120 : f32 to vector<6x54xf32>
    %397 = arith.mulf %396, %395 : vector<6x54xf32>
    %398 = arith.addf %394, %397 : vector<6x54xf32>
    %399 = vector.extract_strided_slice %383 {offsets = [0, 4], sizes = [6, 54], strides = [1, 1]} : vector<6x64xf32> to vector<6x54xf32>
    %cst_121 = arith.constant 0.213005543 : f32
    %400 = vector.broadcast %cst_121 : f32 to vector<6x54xf32>
    %401 = arith.mulf %400, %399 : vector<6x54xf32>
    %402 = arith.addf %398, %401 : vector<6x54xf32>
    %403 = vector.extract_strided_slice %383 {offsets = [0, 5], sizes = [6, 54], strides = [1, 1]} : vector<6x64xf32> to vector<6x54xf32>
    %cst_122 = arith.constant 0.266011745 : f32
    %404 = vector.broadcast %cst_122 : f32 to vector<6x54xf32>
    %405 = arith.mulf %404, %403 : vector<6x54xf32>
    %406 = arith.addf %402, %405 : vector<6x54xf32>
    %407 = vector.extract_strided_slice %383 {offsets = [0, 6], sizes = [6, 54], strides = [1, 1]} : vector<6x64xf32> to vector<6x54xf32>
    %cst_123 = arith.constant 0.213005543 : f32
    %408 = vector.broadcast %cst_123 : f32 to vector<6x54xf32>
    %409 = arith.mulf %408, %407 : vector<6x54xf32>
    %410 = arith.addf %406, %409 : vector<6x54xf32>
    %411 = vector.extract_strided_slice %383 {offsets = [0, 7], sizes = [6, 54], strides = [1, 1]} : vector<6x64xf32> to vector<6x54xf32>
    %cst_124 = arith.constant 0.109360695 : f32
    %412 = vector.broadcast %cst_124 : f32 to vector<6x54xf32>
    %413 = arith.mulf %412, %411 : vector<6x54xf32>
    %414 = arith.addf %410, %413 : vector<6x54xf32>
    %415 = vector.extract_strided_slice %383 {offsets = [0, 8], sizes = [6, 54], strides = [1, 1]} : vector<6x64xf32> to vector<6x54xf32>
    %cst_125 = arith.constant 0.0360007733 : f32
    %416 = vector.broadcast %cst_125 : f32 to vector<6x54xf32>
    %417 = arith.mulf %416, %415 : vector<6x54xf32>
    %418 = arith.addf %414, %417 : vector<6x54xf32>
    %419 = vector.extract_strided_slice %383 {offsets = [0, 9], sizes = [6, 54], strides = [1, 1]} : vector<6x64xf32> to vector<6x54xf32>
    %cst_126 = arith.constant 0.00759875868 : f32
    %420 = vector.broadcast %cst_126 : f32 to vector<6x54xf32>
    %421 = arith.mulf %420, %419 : vector<6x54xf32>
    %422 = arith.addf %418, %421 : vector<6x54xf32>
    %423 = vector.extract_strided_slice %383 {offsets = [0, 10], sizes = [6, 54], strides = [1, 1]} : vector<6x64xf32> to vector<6x54xf32>
    %cst_127 = arith.constant 0.00102838024 : f32
    %424 = vector.broadcast %cst_127 : f32 to vector<6x54xf32>
    %425 = arith.mulf %424, %423 : vector<6x54xf32>
    %426 = arith.addf %422, %425 : vector<6x54xf32>
    %427 = arith.mulf %62, %63 : vector<16x64xf32>
    %428 = vector.extract_strided_slice %427 {offsets = [0, 0], sizes = [6, 64], strides = [1, 1]} : vector<16x64xf32> to vector<6x64xf32>
    %cst_128 = arith.constant 0.00102838024 : f32
    %429 = vector.broadcast %cst_128 : f32 to vector<6x64xf32>
    %430 = arith.mulf %429, %428 : vector<6x64xf32>
    %431 = vector.extract_strided_slice %427 {offsets = [1, 0], sizes = [6, 64], strides = [1, 1]} : vector<16x64xf32> to vector<6x64xf32>
    %cst_129 = arith.constant 0.00759875868 : f32
    %432 = vector.broadcast %cst_129 : f32 to vector<6x64xf32>
    %433 = arith.mulf %432, %431 : vector<6x64xf32>
    %434 = arith.addf %430, %433 : vector<6x64xf32>
    %435 = vector.extract_strided_slice %427 {offsets = [2, 0], sizes = [6, 64], strides = [1, 1]} : vector<16x64xf32> to vector<6x64xf32>
    %cst_130 = arith.constant 0.0360007733 : f32
    %436 = vector.broadcast %cst_130 : f32 to vector<6x64xf32>
    %437 = arith.mulf %436, %435 : vector<6x64xf32>
    %438 = arith.addf %434, %437 : vector<6x64xf32>
    %439 = vector.extract_strided_slice %427 {offsets = [3, 0], sizes = [6, 64], strides = [1, 1]} : vector<16x64xf32> to vector<6x64xf32>
    %cst_131 = arith.constant 0.109360695 : f32
    %440 = vector.broadcast %cst_131 : f32 to vector<6x64xf32>
    %441 = arith.mulf %440, %439 : vector<6x64xf32>
    %442 = arith.addf %438, %441 : vector<6x64xf32>
    %443 = vector.extract_strided_slice %427 {offsets = [4, 0], sizes = [6, 64], strides = [1, 1]} : vector<16x64xf32> to vector<6x64xf32>
    %cst_132 = arith.constant 0.213005543 : f32
    %444 = vector.broadcast %cst_132 : f32 to vector<6x64xf32>
    %445 = arith.mulf %444, %443 : vector<6x64xf32>
    %446 = arith.addf %442, %445 : vector<6x64xf32>
    %447 = vector.extract_strided_slice %427 {offsets = [5, 0], sizes = [6, 64], strides = [1, 1]} : vector<16x64xf32> to vector<6x64xf32>
    %cst_133 = arith.constant 0.266011745 : f32
    %448 = vector.broadcast %cst_133 : f32 to vector<6x64xf32>
    %449 = arith.mulf %448, %447 : vector<6x64xf32>
    %450 = arith.addf %446, %449 : vector<6x64xf32>
    %451 = vector.extract_strided_slice %427 {offsets = [6, 0], sizes = [6, 64], strides = [1, 1]} : vector<16x64xf32> to vector<6x64xf32>
    %cst_134 = arith.constant 0.213005543 : f32
    %452 = vector.broadcast %cst_134 : f32 to vector<6x64xf32>
    %453 = arith.mulf %452, %451 : vector<6x64xf32>
    %454 = arith.addf %450, %453 : vector<6x64xf32>
    %455 = vector.extract_strided_slice %427 {offsets = [7, 0], sizes = [6, 64], strides = [1, 1]} : vector<16x64xf32> to vector<6x64xf32>
    %cst_135 = arith.constant 0.109360695 : f32
    %456 = vector.broadcast %cst_135 : f32 to vector<6x64xf32>
    %457 = arith.mulf %456, %455 : vector<6x64xf32>
    %458 = arith.addf %454, %457 : vector<6x64xf32>
    %459 = vector.extract_strided_slice %427 {offsets = [8, 0], sizes = [6, 64], strides = [1, 1]} : vector<16x64xf32> to vector<6x64xf32>
    %cst_136 = arith.constant 0.0360007733 : f32
    %460 = vector.broadcast %cst_136 : f32 to vector<6x64xf32>
    %461 = arith.mulf %460, %459 : vector<6x64xf32>
    %462 = arith.addf %458, %461 : vector<6x64xf32>
    %463 = vector.extract_strided_slice %427 {offsets = [9, 0], sizes = [6, 64], strides = [1, 1]} : vector<16x64xf32> to vector<6x64xf32>
    %cst_137 = arith.constant 0.00759875868 : f32
    %464 = vector.broadcast %cst_137 : f32 to vector<6x64xf32>
    %465 = arith.mulf %464, %463 : vector<6x64xf32>
    %466 = arith.addf %462, %465 : vector<6x64xf32>
    %467 = vector.extract_strided_slice %427 {offsets = [10, 0], sizes = [6, 64], strides = [1, 1]} : vector<16x64xf32> to vector<6x64xf32>
    %cst_138 = arith.constant 0.00102838024 : f32
    %468 = vector.broadcast %cst_138 : f32 to vector<6x64xf32>
    %469 = arith.mulf %468, %467 : vector<6x64xf32>
    %470 = arith.addf %466, %469 : vector<6x64xf32>
    %471 = vector.extract_strided_slice %470 {offsets = [0, 0], sizes = [6, 54], strides = [1, 1]} : vector<6x64xf32> to vector<6x54xf32>
    %cst_139 = arith.constant 0.00102838024 : f32
    %472 = vector.broadcast %cst_139 : f32 to vector<6x54xf32>
    %473 = arith.mulf %472, %471 : vector<6x54xf32>
    %474 = vector.extract_strided_slice %470 {offsets = [0, 1], sizes = [6, 54], strides = [1, 1]} : vector<6x64xf32> to vector<6x54xf32>
    %cst_140 = arith.constant 0.00759875868 : f32
    %475 = vector.broadcast %cst_140 : f32 to vector<6x54xf32>
    %476 = arith.mulf %475, %474 : vector<6x54xf32>
    %477 = arith.addf %473, %476 : vector<6x54xf32>
    %478 = vector.extract_strided_slice %470 {offsets = [0, 2], sizes = [6, 54], strides = [1, 1]} : vector<6x64xf32> to vector<6x54xf32>
    %cst_141 = arith.constant 0.0360007733 : f32
    %479 = vector.broadcast %cst_141 : f32 to vector<6x54xf32>
    %480 = arith.mulf %479, %478 : vector<6x54xf32>
    %481 = arith.addf %477, %480 : vector<6x54xf32>
    %482 = vector.extract_strided_slice %470 {offsets = [0, 3], sizes = [6, 54], strides = [1, 1]} : vector<6x64xf32> to vector<6x54xf32>
    %cst_142 = arith.constant 0.109360695 : f32
    %483 = vector.broadcast %cst_142 : f32 to vector<6x54xf32>
    %484 = arith.mulf %483, %482 : vector<6x54xf32>
    %485 = arith.addf %481, %484 : vector<6x54xf32>
    %486 = vector.extract_strided_slice %470 {offsets = [0, 4], sizes = [6, 54], strides = [1, 1]} : vector<6x64xf32> to vector<6x54xf32>
    %cst_143 = arith.constant 0.213005543 : f32
    %487 = vector.broadcast %cst_143 : f32 to vector<6x54xf32>
    %488 = arith.mulf %487, %486 : vector<6x54xf32>
    %489 = arith.addf %485, %488 : vector<6x54xf32>
    %490 = vector.extract_strided_slice %470 {offsets = [0, 5], sizes = [6, 54], strides = [1, 1]} : vector<6x64xf32> to vector<6x54xf32>
    %cst_144 = arith.constant 0.266011745 : f32
    %491 = vector.broadcast %cst_144 : f32 to vector<6x54xf32>
    %492 = arith.mulf %491, %490 : vector<6x54xf32>
    %493 = arith.addf %489, %492 : vector<6x54xf32>
    %494 = vector.extract_strided_slice %470 {offsets = [0, 6], sizes = [6, 54], strides = [1, 1]} : vector<6x64xf32> to vector<6x54xf32>
    %cst_145 = arith.constant 0.213005543 : f32
    %495 = vector.broadcast %cst_145 : f32 to vector<6x54xf32>
    %496 = arith.mulf %495, %494 : vector<6x54xf32>
    %497 = arith.addf %493, %496 : vector<6x54xf32>
    %498 = vector.extract_strided_slice %470 {offsets = [0, 7], sizes = [6, 54], strides = [1, 1]} : vector<6x64xf32> to vector<6x54xf32>
    %cst_146 = arith.constant 0.109360695 : f32
    %499 = vector.broadcast %cst_146 : f32 to vector<6x54xf32>
    %500 = arith.mulf %499, %498 : vector<6x54xf32>
    %501 = arith.addf %497, %500 : vector<6x54xf32>
    %502 = vector.extract_strided_slice %470 {offsets = [0, 8], sizes = [6, 54], strides = [1, 1]} : vector<6x64xf32> to vector<6x54xf32>
    %cst_147 = arith.constant 0.0360007733 : f32
    %503 = vector.broadcast %cst_147 : f32 to vector<6x54xf32>
    %504 = arith.mulf %503, %502 : vector<6x54xf32>
    %505 = arith.addf %501, %504 : vector<6x54xf32>
    %506 = vector.extract_strided_slice %470 {offsets = [0, 9], sizes = [6, 54], strides = [1, 1]} : vector<6x64xf32> to vector<6x54xf32>
    %cst_148 = arith.constant 0.00759875868 : f32
    %507 = vector.broadcast %cst_148 : f32 to vector<6x54xf32>
    %508 = arith.mulf %507, %506 : vector<6x54xf32>
    %509 = arith.addf %505, %508 : vector<6x54xf32>
    %510 = vector.extract_strided_slice %470 {offsets = [0, 10], sizes = [6, 54], strides = [1, 1]} : vector<6x64xf32> to vector<6x54xf32>
    %cst_149 = arith.constant 0.00102838024 : f32
    %511 = vector.broadcast %cst_149 : f32 to vector<6x54xf32>
    %512 = arith.mulf %511, %510 : vector<6x54xf32>
    %513 = arith.addf %509, %512 : vector<6x54xf32>
    %514 = arith.mulf %166, %166 : vector<6x54xf32>
    %515 = arith.mulf %252, %252 : vector<6x54xf32>
    %516 = arith.mulf %166, %252 : vector<6x54xf32>
    %517 = arith.subf %339, %514 : vector<6x54xf32>
    %518 = arith.subf %426, %515 : vector<6x54xf32>
    %519 = arith.subf %513, %516 : vector<6x54xf32>
    %cst_150 = arith.constant 2.000000e+00 : f32
    %520 = vector.broadcast %cst_150 : f32 to vector<6x54xf32>
    %521 = arith.mulf %520, %519 : vector<6x54xf32>
    %522 = vector.broadcast %80 : f32 to vector<6x54xf32>
    %523 = arith.addf %521, %522 : vector<6x54xf32>
    %524 = arith.addf %517, %518 : vector<6x54xf32>
    %525 = vector.broadcast %80 : f32 to vector<6x54xf32>
    %526 = arith.addf %524, %525 : vector<6x54xf32>
    %cst_151 = arith.constant 2.000000e+00 : f32
    %527 = vector.broadcast %cst_151 : f32 to vector<6x54xf32>
    %528 = arith.mulf %527, %516 : vector<6x54xf32>
    %529 = vector.broadcast %78 : f32 to vector<6x54xf32>
    %530 = arith.addf %528, %529 : vector<6x54xf32>
    %531 = arith.mulf %530, %523 : vector<6x54xf32>
    %532 = arith.addf %514, %515 : vector<6x54xf32>
    %533 = vector.broadcast %78 : f32 to vector<6x54xf32>
    %534 = arith.addf %532, %533 : vector<6x54xf32>
    %535 = arith.mulf %534, %526 : vector<6x54xf32>
    %536 = arith.divf %531, %535 : vector<6x54xf32>
    %537 = vector.shape_cast %536 : vector<6x54xf32> to vector<1x6x54xf32>
    %cst_152 = arith.constant dense<0.000000e+00> : vector<1xf32>
    %538 = vector.multi_reduction <add>, %537, %cst_152 [1, 2] : vector<1x6x54xf32> to vector<1xf32>
    %539 = vector.shape_cast %538 : vector<1xf32> to vector<1x1x1xf32>
    %540 = vector.extract %539[0, 0, 0] : f32 from vector<1x1x1xf32>
    %cst_153 = arith.constant 3.240000e+02 : f32
    %541 = arith.divf %540, %cst_153 : f32
    %c5 = arith.constant 5 : index
    %542 = memref.load %arg8[%c5] : memref<8xf32, #tpu.memory_space<smem>>
    memref.store %541, %arg8[%c5] : memref<8xf32, #tpu.memory_space<smem>>
    %cst_154 = arith.constant 0.000000e+00 : f32
    %c6 = arith.constant 6 : index
    %543 = memref.load %arg8[%c6] : memref<8xf32, #tpu.memory_space<smem>>
    memref.store %cst_154, %arg8[%c6] : memref<8xf32, #tpu.memory_space<smem>>
    %cst_155 = arith.constant 0.000000e+00 : f32
    %c7 = arith.constant 7 : index
    %544 = memref.load %arg8[%c7] : memref<8xf32, #tpu.memory_space<smem>>
    memref.store %cst_155, %arg8[%c7] : memref<8xf32, #tpu.memory_space<smem>>
    return
  }
}

</mosaic_0001>

<llo_original>
// kernel: tpu_custom_call.1
$region0: #{tpu_custom_call.1}
  #allocation0 [shape = 'u32[]', space=smem, size = 0x4, offset = 0x4, fixed_abs, tag = 'smem constant byte address 0x4 - core index']
  #allocation1 [shape = 'u32[144,128]{1,0:T(1,128)}', space=vmem, size = 0x12000, scoped, tag = 'internal scratch']
  %s0 = inlined_call_operand.vmem [shape: f32[16,64], index: 0, kind: input, shape index: {}]
  %s1 = inlined_call_operand.vmem [shape: f32[16,64], index: 1, kind: input, shape index: {}]
  %s2 = inlined_call_operand.vmem [shape: f32[16,64], index: 2, kind: input, shape index: {}]
  %s3 = inlined_call_operand.vmem [shape: f32[16,64], index: 3, kind: input, shape index: {}]
  %s4 = inlined_call_operand.vmem [shape: f32[16,1], index: 4, kind: input, shape index: {}]
  %s5 = inlined_call_operand.vmem [shape: f32[16,1], index: 5, kind: input, shape index: {}]
  %s6 = inlined_call_operand.vmem [shape: f32[16,1], index: 6, kind: input, shape index: {}]
  %s7 = inlined_call_operand.vmem [shape: f32[16,1], index: 7, kind: input, shape index: {}]
  %s8 = inlined_call_operand.hbm [shape: f32[8], index: 8, kind: output, shape index: {}]
  %s9 = sld [smem:[#allocation0]]
  $region42: #{tpu_custom_call.1} parent=0
    _
  %s11 = ssub.s32 1, %s9
  %s12 = scalar_select 0, %s11, %s9
  $region1: #{tpu_custom_call.1} parent=0
    #allocation2 [shape = 'u8[512]{0}', space=smem, size = 0x200, scoped, tag = 'output window, operand 0, single buffered']
    #allocation3 [shape = 's32[1]{0}', space=sflag, size = 0x4, scoped, tag = 'scoped memory for tpu_custom_call.1']
    %13 = vsyncpa [#allocation3], 0
    // Predicated region
    $region2: #{tpu_custom_call.1} parent=1 // pred_check
      _
    $region3: #{tpu_custom_call.1} parent=1 // pred_check_branch
      %15 = sbr.rel (0) target = $region5
    $region4: #{tpu_custom_call.1} parent=1 // pred_region
      _
    $region5: #{tpu_custom_call.1} parent=1 // pred_fallthru
      _
    // Predicated region
    $region6: #{tpu_custom_call.1} parent=1 // pred_check
      _
    $region7: #{tpu_custom_call.1} parent=1 // pred_check_branch
      %17 = sbr.rel (0) target = $region9
    $region8: #{tpu_custom_call.1} parent=1 // pred_region
      _
    $region9: #{tpu_custom_call.1} parent=1 // pred_fallthru
      _
    // Predicated region
    $region10: #{tpu_custom_call.1} parent=1 // pred_check
      _
    $region11: #{tpu_custom_call.1} parent=1 // pred_check_branch
      %19 = sbr.rel (0) target = $region13
    $region12: #{tpu_custom_call.1} parent=1 // pred_region
      _
    $region13: #{tpu_custom_call.1} parent=1 // pred_fallthru
      _
    // Predicated region
    $region14: #{tpu_custom_call.1} parent=1 // pred_check
      _
    $region15: #{tpu_custom_call.1} parent=1 // pred_check_branch
      %21 = sbr.rel (0) target = $region17
    $region16: #{tpu_custom_call.1} parent=1 // pred_region
      _
    $region17: #{tpu_custom_call.1} parent=1 // pred_fallthru
      _
    // Predicated region
    $region18: #{tpu_custom_call.1} parent=1 // pred_check
      _
    $region19: #{tpu_custom_call.1} parent=1 // pred_check_branch
      %23 = sbr.rel (0) target = $region21
    $region20: #{tpu_custom_call.1} parent=1 // pred_region
      _
    $region21: #{tpu_custom_call.1} parent=1 // pred_fallthru
      _
    // Predicated region
    $region22: #{tpu_custom_call.1} parent=1 // pred_check
      _
    $region23: #{tpu_custom_call.1} parent=1 // pred_check_branch
      %25 = sbr.rel (0) target = $region25
    $region24: #{tpu_custom_call.1} parent=1 // pred_region
      _
    $region25: #{tpu_custom_call.1} parent=1 // pred_fallthru
      _
    // Predicated region
    $region26: #{tpu_custom_call.1} parent=1 // pred_check
      _
    $region27: #{tpu_custom_call.1} parent=1 // pred_check_branch
      %27 = sbr.rel (0) target = $region29
    $region28: #{tpu_custom_call.1} parent=1 // pred_region
      _
    $region29: #{tpu_custom_call.1} parent=1 // pred_fallthru
      _
    // Predicated region
    $region30: #{tpu_custom_call.1} parent=1 // pred_check
      _
    $region31: #{tpu_custom_call.1} parent=1 // pred_check_branch
      %29 = sbr.rel (0) target = $region33
    $region32: #{tpu_custom_call.1} parent=1 // pred_region
      _
    $region33: #{tpu_custom_call.1} parent=1 // pred_fallthru
      _
    %v30 = vld [vmem:[%s0] sm:$0xff]
    %v31 = vld [vmem:[%s0 + $0x8] sm:$0xff]
    %v32 = vld [vmem:[%s1] sm:$0xff]
    %v33 = vld [vmem:[%s1 + $0x8] sm:$0xff]
    %v34 = vld [vmem:[%s2] sm:$0xff]
    %v35 = vld [vmem:[%s2 + $0x8] sm:$0xff]
    %v36 = vld [vmem:[%s3] sm:$0xff]
    %v37 = vld [vmem:[%s3 + $0x8] sm:$0xff]
    %v38 = vsub.f32 1.0, %v36
    %v39 = vsub.f32 1.0, %v37
    %v40 = vmul.f32 %v34, %v38
    %v41 = vmul.f32 %v35, %v39
    %v42 = vsub.f32 %v30, %v32
    %v43 = vsub.f32 %v31, %v33
    %v44 = vmul.f32 %v42, %v42
    %v45 = vmul.f32 %v43, %v43
    %v46 = vmul.f32 %v44, %v40
    %v47 = vmul.f32 %v45, %v41
    %vm48 = vcmask 523264
    %v49 = vsel %vm48, %v34, 0.0
    %50 = vadd.xlane.f32.xlu0 %v49
    %v51 = vpop.xlane.xlu0 %50
    %v52 = vsel %vm48, %v35, 0.0
    %53 = vadd.xlane.f32.xlu0 %v52
    %v54 = vpop.xlane.xlu0 %53
    %v55 = vsel %vm48, %v36, 0.0
    %56 = vadd.xlane.f32.xlu0 %v55
    %v57 = vpop.xlane.xlu0 %56
    %v58 = vsel %vm48, %v37, 0.0
    %59 = vadd.xlane.f32.xlu0 %v58
    %v60 = vpop.xlane.xlu0 %59
    %vm61 = vcmp.gt.f32.partialorder %v51, 0.0
    %vm62 = vcmp.gt.f32.partialorder %v54, 0.0
    %v63 = vsel %vm61, 1.0, 0.0
    %v64 = vsel %vm62, 1.0, 0.0
    %vm65 = vcmp.gt.f32.partialorder %v57, 0.0
    %vm66 = vcmp.gt.f32.partialorder %v60, 0.0
    %v67 = vsel %vm65, 1.0, 0.0
    %v68 = vsel %vm66, 1.0, 0.0
    %v69 = vsub.f32 1.0, %v67
    %v70 = vsub.f32 1.0, %v68
    %v71 = vmul.f32 %v63, %v69
    %v72 = vmul.f32 %v64, %v70
    %v73 = vld [vmem:[%s4] sm:$0xff]
    %v74 = vld [vmem:[%s4 + $0x8] sm:$0xff]
    %v75 = vld [vmem:[%s5] sm:$0xff]
    %v76 = vld [vmem:[%s5 + $0x8] sm:$0xff]
    %v77 = vld [vmem:[%s6] sm:$0xff]
    %v78 = vld [vmem:[%s6 + $0x8] sm:$0xff]
    %v79 = vld [vmem:[%s7] sm:$0xff]
    %v80 = vld [vmem:[%s7 + $0x8] sm:$0xff]
    %vm81 = vcmask 7168
    %v82 = vsel %vm81, %v71, 0.0
    %v83 = vsel %vm81, %v72, 0.0
    %v84 = vadd.f32 %v82, %v83
    %85 = vadd.xlane.f32.xlu0 %v84
    %v86 = vpop.xlane.xlu0 %85
    %v87 = vrot.slane %v86, 4
    %v88 = vadd.f32 %v86, %v87
    %v89 = vrot.slane %v88, 2
    %v90 = vadd.f32 %v88, %v89
    %v91 = vrot.slane %v90, 1
    %v92 = vadd.f32 %v90, %v91
    %s93 = vtos %v92
    %s94 = scalar_lea.smem [#allocation2], 0
    %95 = sst [smem:[%s94]] %s93
    %v96 = vsub.f32 %v73, %v77
    %v97 = vsub.f32 %v74, %v78
    %v98 = vand.u32 2147483647, %v96
    %v99 = vand.u32 2147483647, %v97
    %v100 = vmul.f32 %v98, %v71
    %v101 = vmul.f32 %v99, %v72
    %v102 = vsel %vm81, %v100, 0.0
    %v103 = vsel %vm81, %v101, 0.0
    %v104 = vadd.f32 %v102, %v103
    %105 = vadd.xlane.f32.xlu0 %v104
    %v106 = vpop.xlane.xlu0 %105
    %v107 = vrot.slane %v106, 4
    %v108 = vadd.f32 %v106, %v107
    %v109 = vrot.slane %v108, 2
    %v110 = vadd.f32 %v108, %v109
    %v111 = vrot.slane %v110, 1
    %v112 = vadd.f32 %v110, %v111
    %s113 = vtos %v112
    %s114 = scalar_lea.smem [#allocation2], 1
    %115 = sst [smem:[%s114]] %s113
    %v116 = vsub.f32 %v75, %v79
    %v117 = vsub.f32 %v76, %v80
    %v118 = vand.u32 2147483647, %v116
    %v119 = vand.u32 2147483647, %v117
    %v120 = vmul.f32 %v118, %v71
    %v121 = vmul.f32 %v119, %v72
    %v122 = vsel %vm81, %v120, 0.0
    %v123 = vsel %vm81, %v121, 0.0
    %v124 = vadd.f32 %v122, %v123
    %125 = vadd.xlane.f32.xlu0 %v124
    %v126 = vpop.xlane.xlu0 %125
    %v127 = vrot.slane %v126, 4
    %v128 = vadd.f32 %v126, %v127
    %v129 = vrot.slane %v128, 2
    %v130 = vadd.f32 %v128, %v129
    %v131 = vrot.slane %v130, 1
    %v132 = vadd.f32 %v130, %v131
    %s133 = vtos %v132
    %s134 = scalar_lea.smem [#allocation2], 2
    %135 = sst [smem:[%s134]] %s133
    %v136 = vsel %vm48, %v46, 0.0
    %v137 = vsel %vm48, %v47, 0.0
    %v138 = vadd.f32 %v136, %v137
    %139 = vadd.xlane.f32.xlu0 %v138
    %v140 = vpop.xlane.xlu0 %139
    %v141 = vrot.slane %v140, 4
    %v142 = vadd.f32 %v140, %v141
    %v143 = vrot.slane %v142, 2
    %v144 = vadd.f32 %v142, %v143
    %v145 = vrot.slane %v144, 1
    %v146 = vadd.f32 %v144, %v145
    %s147 = vtos %v146
    %s148 = scalar_lea.smem [#allocation2], 3
    %149 = sst [smem:[%s148]] %s147
    %v150 = vsel %vm48, %v40, 0.0
    %v151 = vsel %vm48, %v41, 0.0
    %v152 = vadd.f32 %v150, %v151
    %153 = vadd.xlane.f32.xlu0 %v152
    %v154 = vpop.xlane.xlu0 %153
    %v155 = vrot.slane %v154, 4
    %v156 = vadd.f32 %v154, %v155
    %v157 = vrot.slane %v156, 2
    %v158 = vadd.f32 %v156, %v157
    %v159 = vrot.slane %v158, 1
    %v160 = vadd.f32 %v158, %v159
    %s161 = vtos %v160
    %s162 = scalar_lea.smem [#allocation2], 4
    %163 = sst [smem:[%s162]] %s161
    %v164 = vmul.f32 %v30, %v40
    %v165 = vmul.f32 %v31, %v41
    %v166 = vmul.f32 %v32, %v40
    %v167 = vmul.f32 %v33, %v41
    %v168 = vsel %vm48, %v164, -inf
    %v169 = vsel %vm48, %v165, -inf
    %v170 = vmax.f32 %v168, %v169
    %171 = vmax.xlane.f32.xlu0 %v170
    %v172 = vpop.xlane.xlu0 %171
    %v173 = vrot.slane %v172, 4
    %v174 = vmax.f32 %v172, %v173
    %v175 = vrot.slane %v174, 2
    %v176 = vmax.f32 %v174, %v175
    %v177 = vrot.slane %v176, 1
    %v178 = vmax.f32 %v176, %v177
    %s179 = vtos %v178
    %p180 = scmp.gt.f32.partialorder %s179, 128.0
    %s181 = scalar_select %p180, 255.0, 1.0
    %v182 = vsel %vm48, %v164, inf
    %v183 = vsel %vm48, %v165, inf
    %v184 = vmin.f32 %v182, %v183
    %185 = vmin.xlane.f32.xlu0 %v184
    %v186 = vpop.xlane.xlu0 %185
    %v187 = vrot.slane %v186, 4
    %v188 = vmin.f32 %v186, %v187
    %v189 = vrot.slane %v188, 2
    %v190 = vmin.f32 %v188, %v189
    %v191 = vrot.slane %v190, 1
    %v192 = vmin.f32 %v190, %v191
    %s193 = vtos %v192
    %p194 = scmp.lt.f32.partialorder %s193, -0.5
    %s195 = scalar_select %p194, -1.0, 0.0
    %s196 = ssub.f32 %s181, %s195
    %s197 = smul.f32 %s196, 0.01
    %s198 = smul.f32 %s197, %s197
    %s199 = smul.f32 %s196, 0.03
    %s200 = smul.f32 %s199, %s199
    %v201 = vmul.f32 %v164, 0.0010283802
    %v202 = vmul.f32 %v164, 0.0075987587
    %v204 = vrot.slane %v202, 1
    %v206 = vadd.f32 %v201, %v204
    %v207 = vmul.f32 %v164, 0.036000773
    %v209 = vrot.slane %v207, 2
    %v211 = vadd.f32 %v206, %v209
    %v212 = vmul.f32 %v164, 0.109360695
    %v213 = vmul.f32 %v165, 0.109360695
    %vm216 = vcmask 1044480
    %v217 = vrot.slane %v212, 3
    %v218 = vrot.slane %v213, 3
    %v219 = vsel %vm216, %v217, %v218
    %v221 = vadd.f32 %v211, %v219
    %v222 = vmul.f32 %v164, 0.21300554
    %v223 = vmul.f32 %v165, 0.21300554
    %vm226 = vcmask 1043456
    %v227 = vrot.slane %v222, 4
    %v228 = vrot.slane %v223, 4
    %v229 = vsel %vm226, %v227, %v228
    %v231 = vadd.f32 %v221, %v229
    %v232 = vmul.f32 %v164, 0.26601174
    %v233 = vmul.f32 %v165, 0.26601174
    %vm236 = vcmask 1042432
    %v237 = vrot.slane %v232, 5
    %v238 = vrot.slane %v233, 5
    %v239 = vsel %vm236, %v237, %v238
    %v241 = vadd.f32 %v231, %v239
    %vm242 = vcmask 1041408
    %v243 = vrot.slane %v222, 6
    %v244 = vrot.slane %v223, 6
    %v245 = vsel %vm242, %v243, %v244
    %v247 = vadd.f32 %v241, %v245
    %vm248 = vcmask 1040384
    %v249 = vrot.slane %v212, 7
    %v250 = vrot.slane %v213, 7
    %v251 = vsel %vm248, %v249, %v250
    %v253 = vadd.f32 %v247, %v251
    %v254 = vmul.f32 %v165, 0.036000773
    %v255 = vadd.f32 %v253, %v254
    %v256 = vmul.f32 %v165, 0.0075987587
    %v258 = vrot.slane %v256, 1
    %v260 = vadd.f32 %v255, %v258
    %v261 = vmul.f32 %v165, 0.0010283802
    %v263 = vrot.slane %v261, 2
    %v265 = vadd.f32 %v260, %v263
    %v266 = vmul.f32 %v265, 0.0010283802
    %v267 = vmul.f32 %v265, 0.0075987587
    %269 = vrot.lane.b32.xlu0 %v267, 127
    %v270 = vpop.permute.xlu0 %269
    %v272 = vadd.f32 %v266, %v270
    %v273 = vmul.f32 %v265, 0.036000773
    %275 = vrot.lane.b32.xlu0 %v273, 126
    %v276 = vpop.permute.xlu0 %275
    %v278 = vadd.f32 %v272, %v276
    %v279 = vmul.f32 %v265, 0.109360695
    %281 = vrot.lane.b32.xlu0 %v279, 125
    %v282 = vpop.permute.xlu0 %281
    %v284 = vadd.f32 %v278, %v282
    %v285 = vmul.f32 %v265, 0.21300554
    %287 = vrot.lane.b32.xlu0 %v285, 124
    %v288 = vpop.permute.xlu0 %287
    %v290 = vadd.f32 %v284, %v288
    %v291 = vmul.f32 %v265, 0.26601174
    %293 = vrot.lane.b32.xlu0 %v291, 123
    %v294 = vpop.permute.xlu0 %293
    %v296 = vadd.f32 %v290, %v294
    %297 = vrot.lane.b32.xlu0 %v285, 122
    %v298 = vpop.permute.xlu0 %297
    %v300 = vadd.f32 %v296, %v298
    %301 = vrot.lane.b32.xlu0 %v279, 121
    %v302 = vpop.permute.xlu0 %301
    %v304 = vadd.f32 %v300, %v302
    %305 = vrot.lane.b32.xlu0 %v273, 120
    %v306 = vpop.permute.xlu0 %305
    %v308 = vadd.f32 %v304, %v306
    %309 = vrot.lane.b32.xlu0 %v267, 119
    %v310 = vpop.permute.xlu0 %309
    %v312 = vadd.f32 %v308, %v310
    %314 = vrot.lane.b32.xlu0 %v266, 118
    %v315 = vpop.permute.xlu0 %314
    %v317 = vadd.f32 %v312, %v315
    %v318 = vmul.f32 %v166, 0.0010283802
    %v319 = vmul.f32 %v166, 0.0075987587
    %v321 = vrot.slane %v319, 1
    %v323 = vadd.f32 %v318, %v321
    %v324 = vmul.f32 %v166, 0.036000773
    %v326 = vrot.slane %v324, 2
    %v328 = vadd.f32 %v323, %v326
    %v329 = vmul.f32 %v166, 0.109360695
    %v330 = vmul.f32 %v167, 0.109360695
    %v333 = vrot.slane %v329, 3
    %v334 = vrot.slane %v330, 3
    %v335 = vsel %vm216, %v333, %v334
    %v337 = vadd.f32 %v328, %v335
    %v338 = vmul.f32 %v166, 0.21300554
    %v339 = vmul.f32 %v167, 0.21300554
    %v342 = vrot.slane %v338, 4
    %v343 = vrot.slane %v339, 4
    %v344 = vsel %vm226, %v342, %v343
    %v346 = vadd.f32 %v337, %v344
    %v347 = vmul.f32 %v166, 0.26601174
    %v348 = vmul.f32 %v167, 0.26601174
    %v351 = vrot.slane %v347, 5
    %v352 = vrot.slane %v348, 5
    %v353 = vsel %vm236, %v351, %v352
    %v355 = vadd.f32 %v346, %v353
    %v356 = vrot.slane %v338, 6
    %v357 = vrot.slane %v339, 6
    %v358 = vsel %vm242, %v356, %v357
    %v360 = vadd.f32 %v355, %v358
    %v361 = vrot.slane %v329, 7
    %v362 = vrot.slane %v330, 7
    %v363 = vsel %vm248, %v361, %v362
    %v365 = vadd.f32 %v360, %v363
    %v366 = vmul.f32 %v167, 0.036000773
    %v367 = vadd.f32 %v365, %v366
    %v368 = vmul.f32 %v167, 0.0075987587
    %v370 = vrot.slane %v368, 1
    %v372 = vadd.f32 %v367, %v370
    %v373 = vmul.f32 %v167, 0.0010283802
    %v375 = vrot.slane %v373, 2
    %v377 = vadd.f32 %v372, %v375
    %v378 = vmul.f32 %v377, 0.0010283802
    %v379 = vmul.f32 %v377, 0.0075987587
    %381 = vrot.lane.b32.xlu0 %v379, 127
    %v382 = vpop.permute.xlu0 %381
    %v384 = vadd.f32 %v378, %v382
    %v385 = vmul.f32 %v377, 0.036000773
    %387 = vrot.lane.b32.xlu0 %v385, 126
    %v388 = vpop.permute.xlu0 %387
    %v390 = vadd.f32 %v384, %v388
    %v391 = vmul.f32 %v377, 0.109360695
    %393 = vrot.lane.b32.xlu0 %v391, 125
    %v394 = vpop.permute.xlu0 %393
    %v396 = vadd.f32 %v390, %v394
    %v397 = vmul.f32 %v377, 0.21300554
    %399 = vrot.lane.b32.xlu0 %v397, 124
    %v400 = vpop.permute.xlu0 %399
    %v402 = vadd.f32 %v396, %v400
    %v403 = vmul.f32 %v377, 0.26601174
    %405 = vrot.lane.b32.xlu0 %v403, 123
    %v406 = vpop.permute.xlu0 %405
    %v408 = vadd.f32 %v402, %v406
    %409 = vrot.lane.b32.xlu0 %v397, 122
    %v410 = vpop.permute.xlu0 %409
    %v412 = vadd.f32 %v408, %v410
    %413 = vrot.lane.b32.xlu0 %v391, 121
    %v414 = vpop.permute.xlu0 %413
    %v416 = vadd.f32 %v412, %v414
    %417 = vrot.lane.b32.xlu0 %v385, 120
    %v418 = vpop.permute.xlu0 %417
    %v420 = vadd.f32 %v416, %v418
    %421 = vrot.lane.b32.xlu0 %v379, 119
    %v422 = vpop.permute.xlu0 %421
    %v424 = vadd.f32 %v420, %v422
    %426 = vrot.lane.b32.xlu0 %v378, 118
    %v427 = vpop.permute.xlu0 %426
    %v429 = vadd.f32 %v424, %v427
    %v430 = vmul.f32 %v164, %v164
    %v431 = vmul.f32 %v165, %v165
    %v432 = vmul.f32 %v430, 0.0010283802
    %v433 = vmul.f32 %v430, 0.0075987587
    %v435 = vrot.slane %v433, 1
    %v437 = vadd.f32 %v432, %v435
    %v438 = vmul.f32 %v430, 0.036000773
    %v440 = vrot.slane %v438, 2
    %v442 = vadd.f32 %v437, %v440
    %v443 = vmul.f32 %v430, 0.109360695
    %v444 = vmul.f32 %v431, 0.109360695
    %v447 = vrot.slane %v443, 3
    %v448 = vrot.slane %v444, 3
    %v449 = vsel %vm216, %v447, %v448
    %v451 = vadd.f32 %v442, %v449
    %v452 = vmul.f32 %v430, 0.21300554
    %v453 = vmul.f32 %v431, 0.21300554
    %v456 = vrot.slane %v452, 4
    %v457 = vrot.slane %v453, 4
    %v458 = vsel %vm226, %v456, %v457
    %v460 = vadd.f32 %v451, %v458
    %v461 = vmul.f32 %v430, 0.26601174
    %v462 = vmul.f32 %v431, 0.26601174
    %v465 = vrot.slane %v461, 5
    %v466 = vrot.slane %v462, 5
    %v467 = vsel %vm236, %v465, %v466
    %v469 = vadd.f32 %v460, %v467
    %v470 = vrot.slane %v452, 6
    %v471 = vrot.slane %v453, 6
    %v472 = vsel %vm242, %v470, %v471
    %v474 = vadd.f32 %v469, %v472
    %v475 = vrot.slane %v443, 7
    %v476 = vrot.slane %v444, 7
    %v477 = vsel %vm248, %v475, %v476
    %v479 = vadd.f32 %v474, %v477
    %v480 = vmul.f32 %v431, 0.036000773
    %v481 = vadd.f32 %v479, %v480
    %v482 = vmul.f32 %v431, 0.0075987587
    %v484 = vrot.slane %v482, 1
    %v486 = vadd.f32 %v481, %v484
    %v487 = vmul.f32 %v431, 0.0010283802
    %v489 = vrot.slane %v487, 2
    %v491 = vadd.f32 %v486, %v489
    %v492 = vmul.f32 %v491, 0.0010283802
    %v493 = vmul.f32 %v491, 0.0075987587
    %495 = vrot.lane.b32.xlu0 %v493, 127
    %v496 = vpop.permute.xlu0 %495
    %v498 = vadd.f32 %v492, %v496
    %v499 = vmul.f32 %v491, 0.036000773
    %501 = vrot.lane.b32.xlu0 %v499, 126
    %v502 = vpop.permute.xlu0 %501
    %v504 = vadd.f32 %v498, %v502
    %v505 = vmul.f32 %v491, 0.109360695
    %507 = vrot.lane.b32.xlu0 %v505, 125
    %v508 = vpop.permute.xlu0 %507
    %v510 = vadd.f32 %v504, %v508
    %v511 = vmul.f32 %v491, 0.21300554
    %513 = vrot.lane.b32.xlu0 %v511, 124
    %v514 = vpop.permute.xlu0 %513
    %v516 = vadd.f32 %v510, %v514
    %v517 = vmul.f32 %v491, 0.26601174
    %519 = vrot.lane.b32.xlu0 %v517, 123
    %v520 = vpop.permute.xlu0 %519
    %v522 = vadd.f32 %v516, %v520
    %523 = vrot.lane.b32.xlu0 %v511, 122
    %v524 = vpop.permute.xlu0 %523
    %v526 = vadd.f32 %v522, %v524
    %527 = vrot.lane.b32.xlu0 %v505, 121
    %v528 = vpop.permute.xlu0 %527
    %v530 = vadd.f32 %v526, %v528
    %531 = vrot.lane.b32.xlu0 %v499, 120
    %v532 = vpop.permute.xlu0 %531
    %v534 = vadd.f32 %v530, %v532
    %535 = vrot.lane.b32.xlu0 %v493, 119
    %v536 = vpop.permute.xlu0 %535
    %v538 = vadd.f32 %v534, %v536
    %540 = vrot.lane.b32.xlu0 %v492, 118
    %v541 = vpop.permute.xlu0 %540
    %v543 = vadd.f32 %v538, %v541
    %v544 = vmul.f32 %v166, %v166
    %v545 = vmul.f32 %v167, %v167
    %v546 = vmul.f32 %v544, 0.0010283802
    %v547 = vmul.f32 %v544, 0.0075987587
    %v549 = vrot.slane %v547, 1
    %v551 = vadd.f32 %v546, %v549
    %v552 = vmul.f32 %v544, 0.036000773
    %v554 = vrot.slane %v552, 2
    %v556 = vadd.f32 %v551, %v554
    %v557 = vmul.f32 %v544, 0.109360695
    %v558 = vmul.f32 %v545, 0.109360695
    %v561 = vrot.slane %v557, 3
    %v562 = vrot.slane %v558, 3
    %v563 = vsel %vm216, %v561, %v562
    %v565 = vadd.f32 %v556, %v563
    %v566 = vmul.f32 %v544, 0.21300554
    %v567 = vmul.f32 %v545, 0.21300554
    %v570 = vrot.slane %v566, 4
    %v571 = vrot.slane %v567, 4
    %v572 = vsel %vm226, %v570, %v571
    %v574 = vadd.f32 %v565, %v572
    %v575 = vmul.f32 %v544, 0.26601174
    %v576 = vmul.f32 %v545, 0.26601174
    %v579 = vrot.slane %v575, 5
    %v580 = vrot.slane %v576, 5
    %v581 = vsel %vm236, %v579, %v580
    %v583 = vadd.f32 %v574, %v581
    %v584 = vrot.slane %v566, 6
    %v585 = vrot.slane %v567, 6
    %v586 = vsel %vm242, %v584, %v585
    %v588 = vadd.f32 %v583, %v586
    %v589 = vrot.slane %v557, 7
    %v590 = vrot.slane %v558, 7
    %v591 = vsel %vm248, %v589, %v590
    %v593 = vadd.f32 %v588, %v591
    %v594 = vmul.f32 %v545, 0.036000773
    %v595 = vadd.f32 %v593, %v594
    %v596 = vmul.f32 %v545, 0.0075987587
    %v598 = vrot.slane %v596, 1
    %v600 = vadd.f32 %v595, %v598
    %v601 = vmul.f32 %v545, 0.0010283802
    %v603 = vrot.slane %v601, 2
    %v605 = vadd.f32 %v600, %v603
    %v606 = vmul.f32 %v605, 0.0010283802
    %v607 = vmul.f32 %v605, 0.0075987587
    %609 = vrot.lane.b32.xlu0 %v607, 127
    %v610 = vpop.permute.xlu0 %609
    %v612 = vadd.f32 %v606, %v610
    %v613 = vmul.f32 %v605, 0.036000773
    %615 = vrot.lane.b32.xlu0 %v613, 126
    %v616 = vpop.permute.xlu0 %615
    %v618 = vadd.f32 %v612, %v616
    %v619 = vmul.f32 %v605, 0.109360695
    %621 = vrot.lane.b32.xlu0 %v619, 125
    %v622 = vpop.permute.xlu0 %621
    %v624 = vadd.f32 %v618, %v622
    %v625 = vmul.f32 %v605, 0.21300554
    %627 = vrot.lane.b32.xlu0 %v625, 124
    %v628 = vpop.permute.xlu0 %627
    %v630 = vadd.f32 %v624, %v628
    %v631 = vmul.f32 %v605, 0.26601174
    %633 = vrot.lane.b32.xlu0 %v631, 123
    %v634 = vpop.permute.xlu0 %633
    %v636 = vadd.f32 %v630, %v634
    %637 = vrot.lane.b32.xlu0 %v625, 122
    %v638 = vpop.permute.xlu0 %637
    %v640 = vadd.f32 %v636, %v638
    %641 = vrot.lane.b32.xlu0 %v619, 121
    %v642 = vpop.permute.xlu0 %641
    %v644 = vadd.f32 %v640, %v642
    %645 = vrot.lane.b32.xlu0 %v613, 120
    %v646 = vpop.permute.xlu0 %645
    %v648 = vadd.f32 %v644, %v646
    %649 = vrot.lane.b32.xlu0 %v607, 119
    %v650 = vpop.permute.xlu0 %649
    %v652 = vadd.f32 %v648, %v650
    %654 = vrot.lane.b32.xlu0 %v606, 118
    %v655 = vpop.permute.xlu0 %654
    %v657 = vadd.f32 %v652, %v655
    %v658 = vmul.f32 %v164, %v166
    %v659 = vmul.f32 %v165, %v167
    %v660 = vmul.f32 %v658, 0.0010283802
    %v661 = vmul.f32 %v658, 0.0075987587
    %v663 = vrot.slane %v661, 1
    %v665 = vadd.f32 %v660, %v663
    %v666 = vmul.f32 %v658, 0.036000773
    %v668 = vrot.slane %v666, 2
    %v670 = vadd.f32 %v665, %v668
    %v671 = vmul.f32 %v658, 0.109360695
    %v672 = vmul.f32 %v659, 0.109360695
    %v675 = vrot.slane %v671, 3
    %v676 = vrot.slane %v672, 3
    %v677 = vsel %vm216, %v675, %v676
    %v679 = vadd.f32 %v670, %v677
    %v680 = vmul.f32 %v658, 0.21300554
    %v681 = vmul.f32 %v659, 0.21300554
    %v684 = vrot.slane %v680, 4
    %v685 = vrot.slane %v681, 4
    %v686 = vsel %vm226, %v684, %v685
    %v688 = vadd.f32 %v679, %v686
    %v689 = vmul.f32 %v658, 0.26601174
    %v690 = vmul.f32 %v659, 0.26601174
    %v693 = vrot.slane %v689, 5
    %v694 = vrot.slane %v690, 5
    %v695 = vsel %vm236, %v693, %v694
    %v697 = vadd.f32 %v688, %v695
    %v698 = vrot.slane %v680, 6
    %v699 = vrot.slane %v681, 6
    %v700 = vsel %vm242, %v698, %v699
    %v702 = vadd.f32 %v697, %v700
    %v703 = vrot.slane %v671, 7
    %v704 = vrot.slane %v672, 7
    %v705 = vsel %vm248, %v703, %v704
    %v707 = vadd.f32 %v702, %v705
    %v708 = vmul.f32 %v659, 0.036000773
    %v709 = vadd.f32 %v707, %v708
    %v710 = vmul.f32 %v659, 0.0075987587
    %v712 = vrot.slane %v710, 1
    %v714 = vadd.f32 %v709, %v712
    %v715 = vmul.f32 %v659, 0.0010283802
    %v717 = vrot.slane %v715, 2
    %v719 = vadd.f32 %v714, %v717
    %v720 = vmul.f32 %v719, 0.0010283802
    %v721 = vmul.f32 %v719, 0.0075987587
    %723 = vrot.lane.b32.xlu0 %v721, 127
    %v724 = vpop.permute.xlu0 %723
    %v726 = vadd.f32 %v720, %v724
    %v727 = vmul.f32 %v719, 0.036000773
    %729 = vrot.lane.b32.xlu0 %v727, 126
    %v730 = vpop.permute.xlu0 %729
    %v732 = vadd.f32 %v726, %v730
    %v733 = vmul.f32 %v719, 0.109360695
    %735 = vrot.lane.b32.xlu0 %v733, 125
    %v736 = vpop.permute.xlu0 %735
    %v738 = vadd.f32 %v732, %v736
    %v739 = vmul.f32 %v719, 0.21300554
    %741 = vrot.lane.b32.xlu0 %v739, 124
    %v742 = vpop.permute.xlu0 %741
    %v744 = vadd.f32 %v738, %v742
    %v745 = vmul.f32 %v719, 0.26601174
    %747 = vrot.lane.b32.xlu0 %v745, 123
    %v748 = vpop.permute.xlu0 %747
    %v750 = vadd.f32 %v744, %v748
    %751 = vrot.lane.b32.xlu0 %v739, 122
    %v752 = vpop.permute.xlu0 %751
    %v754 = vadd.f32 %v750, %v752
    %755 = vrot.lane.b32.xlu0 %v733, 121
    %v756 = vpop.permute.xlu0 %755
    %v758 = vadd.f32 %v754, %v756
    %759 = vrot.lane.b32.xlu0 %v727, 120
    %v760 = vpop.permute.xlu0 %759
    %v762 = vadd.f32 %v758, %v760
    %763 = vrot.lane.b32.xlu0 %v721, 119
    %v764 = vpop.permute.xlu0 %763
    %v766 = vadd.f32 %v762, %v764
    %768 = vrot.lane.b32.xlu0 %v720, 118
    %v769 = vpop.permute.xlu0 %768
    %v771 = vadd.f32 %v766, %v769
    %v772 = vmul.f32 %v317, %v317
    %v773 = vmul.f32 %v429, %v429
    %v774 = vmul.f32 %v317, %v429
    %v775 = vsub.f32 %v543, %v772
    %v776 = vsub.f32 %v657, %v773
    %v777 = vsub.f32 %v771, %v774
    %v778 = vmul.f32 %v777, 2.0
    %v779 = vstv %s200
    %v780 = vadd.f32 %v778, %v779
    %v781 = vadd.f32 %v775, %v776
    %v782 = vadd.f32 %v781, %v779
    %v783 = vmul.f32 %v774, 2.0
    %v784 = vstv %s198
    %v785 = vadd.f32 %v783, %v784
    %v786 = vmul.f32 %v785, %v780
    %v787 = vadd.f32 %v772, %v773
    %v788 = vadd.f32 %v787, %v784
    %v789 = vmul.f32 %v788, %v782
    %v790 = vrcp.pop %v789
    %v791 = vmul.f32 %v786, %v790
    %vm792 = vcmask 439296
    %v793 = vsel %vm792, %v791, 0.0
    %794 = vadd.xlane.f32.xlu0 %v793
    %v795 = vpop.xlane.xlu0 %794
    %v796 = vrot.slane %v795, 4
    %v797 = vadd.f32 %v795, %v796
    %v798 = vrot.slane %v797, 2
    %v799 = vadd.f32 %v797, %v798
    %v800 = vrot.slane %v799, 1
    %v801 = vadd.f32 %v799, %v800
    %s802 = vtos %v801
    %v803 = vrcp.pop 324.0
    %s804 = vtos %v803
    %s805 = smul.f32 %s802, %s804
    %s806 = scalar_lea.smem [#allocation2], 5
    %807 = sst [smem:[%s806]] %s805
    %s808 = scalar_lea.smem [#allocation2], 6
    %809 = sst [smem:[%s808]] 0.0
    %s810 = scalar_lea.smem [#allocation2], 7
    %811 = sst [smem:[%s810]] 0.0
    // Predicated region
    $region34: #{tpu_custom_call.1} parent=1 // pred_check
      _
    $region35: #{tpu_custom_call.1} parent=1 // pred_check_branch
      %813 = sbr.rel (0) target = $region37
    $region36: #{tpu_custom_call.1} parent=1 // pred_region
      %s815 = ssub.s32 16, 16
      %816 = vsyncadd [#allocation3], %s815
      %819 = dma.smem_to_hbm [#allocation2], 16, %s8, [#allocation3]
    $region37: #{tpu_custom_call.1} parent=1 // pred_fallthru
      _
    // Predicated region
    $region38: #{tpu_custom_call.1} parent=1 // pred_check
      _
    $region39: #{tpu_custom_call.1} parent=1 // pred_check_branch
      %821 = sbr.rel (0) target = $region41
    $region40: #{tpu_custom_call.1} parent=1 // pred_region
      %822 = dma.done [#allocation3], 16
    $region41: #{tpu_custom_call.1} parent=1 // pred_fallthru
      _
    %823 = sfence
    %824 = vsyncpa [#allocation3], 1

</llo_original>
